<compile_context>
chip_gen: v7x
topology: tpu7x:2x2x1
jax: 0.10.0
libtpu: 0.0.40
codegen_flags: <defaults>
</compile_context>

<pallas_src>
import functools

import jax
import jax.numpy as jnp
from jax.experimental import pallas as pl
from jax.experimental.pallas import tpu as pltpu


_COMPUTE_DTYPE = jnp.bfloat16


# ---------------------------------------------------------------------------
# Per-generation VMEM budget
# ---------------------------------------------------------------------------

def _query_vmem_capacity_bytes():
    try:
        info = pltpu.get_tpu_info()
        cap = int(getattr(info, "vmem_capacity_bytes", 0) or 0)
        if cap > 0:
            return cap
    except Exception:
        pass
    return 64 * 1024 * 1024          # conservative default = v7x per-TC VMEM


_VMEM_CAP_BYTES = _query_vmem_capacity_bytes()
_VMEM_LIMIT_BYTES = max(32 * 1024 * 1024,
                        min(int(_VMEM_CAP_BYTES * 0.75), 96 * 1024 * 1024))


# ---------------------------------------------------------------------------
# Single-buffering probe (pipeline_mode=pl.Buffered(1) on invariant blocks)
# ---------------------------------------------------------------------------

_SINGLE_BUFFER_OK = None


def _single_buffer_supported():
    """Probe once whether this JAX/Mosaic build accepts pl.Buffered(1)."""
    global _SINGLE_BUFFER_OK
    if _SINGLE_BUFFER_OK is not None:
        return _SINGLE_BUFFER_OK
    try:
        def _k(x_ref, o_ref):
            o_ref[...] = x_ref[...] + 1.0

        spec = pl.BlockSpec((8, 128), lambda i: (0, 0),
                            pipeline_mode=pl.Buffered(1))
        fn = pl.pallas_call(
            _k,
            out_shape=jax.ShapeDtypeStruct((8, 128), jnp.float32),
            grid=(1,),
            in_specs=[spec],
            out_specs=pl.BlockSpec((8, 128), lambda i: (0, 0)),
        )
        jax.block_until_ready(fn(jnp.zeros((8, 128), jnp.float32)))
        _SINGLE_BUFFER_OK = True
    except Exception:
        _SINGLE_BUFFER_OK = False
    return _SINGLE_BUFFER_OK


def _spec(block, index_map, *, single_buffer=False):
    if single_buffer and _single_buffer_supported():
        return pl.BlockSpec(block, index_map, pipeline_mode=pl.Buffered(1))
    return pl.BlockSpec(block, index_map)


# ---------------------------------------------------------------------------
# Row-tile selection from the actual per-layer VMEM footprint
# ---------------------------------------------------------------------------

def _pick_row_tile(H, W, Cin, Cout, pool):
    """Largest divisor-of-H row tile (<=64) whose VMEM footprint fits."""
    budget = int(_VMEM_LIMIT_BYTES * 0.55)
    bufs = 1 if _single_buffer_supported() else 2
    img_bytes = bufs * H * W * Cin * 2            # resident bf16 activation
    w_bytes = bufs * 9 * Cin * Cout * 2           # bf16 weights

    def footprint(th):
        slab = (th + 2) * (W + 2) * Cin * 2       # halo scratch (bf16)
        acc = th * W * Cout * 4                   # f32 accumulator
        out = 2 * th * W * Cout * 2 // (4 if pool else 1)   # dbl-buffered out
        if Cin < 128:
            tmp = th * W * 9 * Cin * 2            # im2col patch temporaries
        else:
            tmp = 2 * th * W * Cin * 2            # shifted tap loads
        return img_bytes + w_bytes + slab + acc + out + tmp

    for th in range(min(H, 64), 0, -1):
        if H % th:
            continue
        if pool and th % 2:
            continue
        if footprint(th) <= budget:
            return th
    return 2 if pool else 1          # VGG pools always see even H/W


# ---------------------------------------------------------------------------
# Fused conv3x3 + bias + ReLU (+ optional 2x2 max-pool) kernel
# ---------------------------------------------------------------------------

def _conv3x3_relu_kernel(x_ref, w_ref, b_ref, o_ref, slab_ref, *,
                         th, pool, mode):
    """x_ref:    (H, W, Cin)        full unpadded image (resident block)
       w_ref:    weights, layout depends on `mode` (see conv3x3_relu)
       b_ref:    (1, Cout)          f32 bias
       o_ref:    (th, W, Cout)      or (th//2, W//2, Cout) when pool=True
       slab_ref: (th+2, W+2, Cin)   VMEM scratch: per-tile zero-padded halo
                 slab, rebuilt every step so row tiles are independent.
    """
    r = pl.program_id(1)
    n_rt = pl.num_programs(1)
    H, W, Cin = x_ref.shape
    Cout = b_ref.shape[1]
    dt = x_ref.dtype

    # --- build the per-tile halo slab with direct stores (no concatenates) ---
    zcol = jnp.zeros((th + 2, 1, Cin), dt)
    slab_ref[:, 0:1, :] = zcol                                  # left border
    slab_ref[:, W + 1:W + 2, :] = zcol                          # right border
    slab_ref[pl.ds(1, th), pl.ds(1, W), :] = x_ref[pl.ds(r * th, th)]
    top = x_ref[pl.ds(jnp.maximum(r * th - 1, 0), 1)]           # (1, W, Cin)
    slab_ref[pl.ds(0, 1), pl.ds(1, W), :] = jnp.where(
        r == 0, jnp.zeros_like(top), top)
    bot = x_ref[pl.ds(jnp.minimum(r * th + th, H - 1), 1)]
    slab_ref[pl.ds(th + 1, 1), pl.ds(1, W), :] = jnp.where(
        r == n_rt - 1, jnp.zeros_like(bot), bot)

    def tap(dy, dx):                         # shifted (th, W, Cin) window
        return slab_ref[dy:dy + th, dx:dx + W, :]

    if mode == "im2col9":
        # Tiny Cin (first layer): full 9-tap im2col, single matmul, K = 9*Cin.
        patch = jnp.concatenate(
            [tap(dy, dx) for dy in range(3) for dx in range(3)],
            axis=-1).reshape(th * W, 9 * Cin)
        acc = jnp.dot(patch, w_ref[...], preferred_element_type=jnp.float32)
    elif mode == "folded3":
        # Cin = 64: dx folded into K (K = 3*Cin = 192) -> 3 matmuls.
        def dy_patch(dy):
            return jnp.concatenate([tap(dy, dx) for dx in range(3)],
                                   axis=-1).reshape(th * W, 3 * Cin)
        acc = jnp.dot(dy_patch(0), w_ref[0], preferred_element_type=jnp.float32)
        acc = acc + jnp.dot(dy_patch(1), w_ref[1],
                            preferred_element_type=jnp.float32)
        acc = acc + jnp.dot(dy_patch(2), w_ref[2],
                            preferred_element_type=jnp.float32)
    else:
        # Cin >= 128: K = Cin already fills the MXU depth -> 9 per-tap matmuls,
        # no lane-axis im2col concatenates.
        acc = None
        for dy in range(3):
            for dx in range(3):
                p = tap(dy, dx).reshape(th * W, Cin)
                d = jnp.dot(p, w_ref[dy, dx],
                            preferred_element_type=jnp.float32)
                acc = d if acc is None else acc + d

    acc = jnp.maximum(acc + b_ref[...], 0.0)                    # bias+ReLU (f32)

    if pool:
        # 2x2 stride-2 max-pool fused into the output write.
        a = acc.reshape(th, W // 2, 2, Cout)
        a = jnp.maximum(a[:, :, 0, :], a[:, :, 1, :])           # pool along W
        a = a.reshape(th // 2, 2, W // 2, Cout)
        a = jnp.maximum(a[:, 0, :, :], a[:, 1, :, :])           # pool along H
        o_ref[...] = a.astype(o_ref.dtype)
    else:
        o_ref[...] = acc.reshape(th, W, Cout).astype(o_ref.dtype)


def conv3x3_relu(x_nhwc, w, b, *, pool=False):
    """x_nhwc: (N, H, W, Cin); w: (3, 3, Cin, Cout) f32 HWIO; b: (Cout,) f32."""
    N, H, W, Cin = x_nhwc.shape
    Cout = w.shape[-1]

    x = x_nhwc.astype(_COMPUTE_DTYPE)
    b_p = b.reshape(1, Cout).astype(jnp.float32)

    if Cin < 16:
        mode = "im2col9"
        w_p = w.reshape(9 * Cin, Cout).astype(_COMPUTE_DTYPE)
        w_map = lambda n, r: (0, 0)
    elif Cin < 128:
        mode = "folded3"                         # keep K=3*Cin (v5e MXU note)
        w_p = w.reshape(3, 3 * Cin, Cout).astype(_COMPUTE_DTYPE)
        w_map = lambda n, r: (0, 0, 0)
    else:
        mode = "pertap"
        w_p = w.astype(_COMPUTE_DTYPE)           # (3, 3, Cin, Cout)
        w_map = lambda n, r: (0, 0, 0, 0)

    th = _pick_row_tile(H, W, Cin, Cout, pool)
    n_rt = H // th
    Ho, Wo = (H // 2, W // 2) if pool else (H, W)
    out_block = (None, th // 2, Wo, Cout) if pool else (None, th, W, Cout)

    kernel = functools.partial(_conv3x3_relu_kernel,
                               th=th, pool=pool, mode=mode)

    flops = 2 * N * H * W * 9 * Cin * Cout
    bytes_accessed = (N * H * W * Cin + N * Ho * Wo * Cout
                      + 9 * Cin * Cout) * 2 + Cout * 4

    # TODO(synk): for the Cout=64 layers a lane-dense (1, th, W*64) output
    # layout (merged last two dims) would avoid masked partial stores; skipped
    # here to keep the inter-layer NHWC contract simple.
    return pl.pallas_call(
        kernel,
        out_shape=jax.ShapeDtypeStruct((N, Ho, Wo, Cout), _COMPUTE_DTYPE),
        grid_spec=pltpu.PrefetchScalarGridSpec(
            num_scalar_prefetch=0,
            grid=(N, n_rt),
            in_specs=[
                # Full image per batch element; row tiles slice their halo out
                # of this resident block (single-buffered when supported).
                _spec((None, H, W, Cin), lambda n, r: (n, 0, 0, 0),
                      single_buffer=True),
                # Grid-invariant weights / bias, single-buffered.
                _spec(w_p.shape, w_map, single_buffer=True),
                _spec((1, Cout), lambda n, r: (0, 0), single_buffer=True),
            ],
            out_specs=pl.BlockSpec(out_block, lambda n, r: (n, r, 0, 0)),
            scratch_shapes=[pltpu.VMEM((th + 2, W + 2, Cin), _COMPUTE_DTYPE)],
        ),
        compiler_params=pltpu.CompilerParams(
            # Row tiles are independent (per-tile halo slab), so both axes are
            # megacore-parallel; useful on v7x even at batch 1.
            dimension_semantics=("parallel", "parallel"),
            vmem_limit_bytes=_VMEM_LIMIT_BYTES,
        ),
        cost_estimate=pl.CostEstimate(flops=flops, transcendentals=0,
                                      bytes_accessed=bytes_accessed),
    )(x, w_p, b_p)


# ---------------------------------------------------------------------------
# VGG19 structure.  Each entry is (Cin, Cout, pool_after); the 2x2 max-pool is
# fused with the conv+ReLU that immediately precedes it (true for every pool
# in vgg19.features[0:30]).  Slices match the PyTorch module:
#   slice1=[0:2], slice2=[2:7], slice3=[7:12], slice4=[12:21], slice5=[21:30]
# ---------------------------------------------------------------------------

VGG19_SLICES = [
    [(3, 64, False)],
    [(64, 64, True), (64, 128, False)],
    [(128, 128, True), (128, 256, False)],
    [(256, 256, False), (256, 256, False), (256, 256, True), (256, 512, False)],
    [(512, 512, False), (512, 512, False), (512, 512, True), (512, 512, False)],
]
# TODO(synk): the original module loads pretrained vgg19 weights from disk; no
# file I/O here, so deterministic synthetic weights with the true shapes are used.


def init_params(key):
    params = []
    for sl in VGG19_SLICES:
        sl_params = []
        for cin, cout, _pool in sl:
            key, k1, k2 = jax.random.split(key, 3)
            std = (2.0 / (9 * cin)) ** 0.5
            w = jax.random.normal(k1, (3, 3, cin, cout), jnp.float32) * std
            b = jax.random.normal(k2, (cout,), jnp.float32) * 0.01
            sl_params.append((w, b))
        params.append(sl_params)
    return params


def vgg19_forward(x_nchw, params):
    """Matches VGG19.forward: returns [relu1, relu2, relu3, relu4, relu5] (NCHW)."""
    x = jnp.transpose(x_nchw, (0, 2, 3, 1)).astype(_COMPUTE_DTYPE)  # NCHW -> NHWC
    outs = []
    for sl_ops, sl_params in zip(VGG19_SLICES, params):
        for (cin, cout, pool), (w, b) in zip(sl_ops, sl_params):
            x = conv3x3_relu(x, w, b, pool=pool)
        outs.append(jnp.transpose(x.astype(jnp.float32), (0, 3, 1, 2)))
    return outs


def vgg19_reference(x_nchw, params):
    """Pure-JAX reference with the same bf16 activation/weight quantization."""
    x = jnp.transpose(x_nchw, (0, 2, 3, 1)).astype(jnp.bfloat16)
    outs = []
    for sl_ops, sl_params in zip(VGG19_SLICES, params):
        for (cin, cout, pool), (w, b) in zip(sl_ops, sl_params):
            y = jax.lax.conv_general_dilated(
                x, w.astype(jnp.bfloat16), (1, 1), "SAME",
                dimension_numbers=("NHWC", "HWIO", "NHWC"),
                preferred_element_type=jnp.float32)
            y = jnp.maximum(y + b[None, None, None, :].astype(jnp.float32), 0.0)
            if pool:
                N, H, W, C = y.shape
                y = y.reshape(N, H // 2, 2, W // 2, 2, C).max(axis=(2, 4))
            x = y.astype(jnp.bfloat16)
        outs.append(jnp.transpose(x.astype(jnp.float32), (0, 3, 1, 2)))
    return outs


if __name__ == "__main__":
    key = jax.random.PRNGKey(0)
    kx, kp = jax.random.split(key)

    # PyTorch NCHW convention: batch=2, 3 channels, 16x16 spatial.
    x = jax.random.normal(kx, (2, 3, 16, 16), jnp.float32)
    params = init_params(kp)

    outs = jax.block_until_ready(vgg19_forward(x, params))
    refs = vgg19_reference(x, params)

    expected_shapes = [(2, 64, 16, 16), (2, 128, 8, 8), (2, 256, 4, 4),
                       (2, 512, 2, 2), (2, 512, 1, 1)]
    for o, r, s in zip(outs, refs, expected_shapes):
        assert o.shape == s, (o.shape, s)
        err = float(jnp.max(jnp.abs(o - r)) / (jnp.max(jnp.abs(r)) + 1e-6))
        assert err < 0.05, f"mismatch vs reference, normalized max err={err}"

    print("KERNEL_OK")
</pallas_src>

<mosaic_0001>
module attributes {stable_mosaic.version = 11 : i64} {
  func.func @_k(%arg0: i32, %arg1: memref<8x128xf32, #tpu.memory_space<vmem>>, %arg2: memref<8x128xf32, #tpu.memory_space<vmem>>) attributes {dimension_semantics = [#tpu.dimension_semantics<arbitrary>], iteration_bounds = array<i64: 1>, scalar_prefetch = 0 : i64, scratch_operands = 0 : i64, tpu.core_type = #tpu.core_type<tc>, window_params = [{pipeline_mode = #tpu.pipeline_mode<synchronous>, transform_indices = @transform_0, window_bounds = array<i64: 8, 128>}, {pipeline_mode = #tpu.pipeline_mode<synchronous>, transform_indices = @transform_1, window_bounds = array<i64: 8, 128>}]} {
    %c0 = arith.constant 0 : index
    %c0_0 = arith.constant 0 : index
    %0 = vector.load %arg1[%c0, %c0_0] : memref<8x128xf32, #tpu.memory_space<vmem>>, vector<8x128xf32>
    %cst = arith.constant 1.000000e+00 : f32
    %1 = vector.broadcast %cst : f32 to vector<8x128xf32>
    %2 = arith.addf %0, %1 : vector<8x128xf32>
    %c0_1 = arith.constant 0 : index
    %c0_2 = arith.constant 0 : index
    %3 = vector.load %arg2[%c0_1, %c0_2] : memref<8x128xf32, #tpu.memory_space<vmem>>, vector<8x128xf32>
    tpu.vector_store %arg2[%c0_1, %c0_2], %2 {strides = array<i32>} : memref<8x128xf32, #tpu.memory_space<vmem>>, vector<8x128xf32>,
    return
  }
  func.func @transform_0(%arg0: i32) -> (i32, i32) {
    %c0_i32 = arith.constant 0 : i32
    %c0_i32_0 = arith.constant 0 : i32
    %c0_i32_1 = arith.constant 0 : i32
    return %c0_i32, %c0_i32_0 : i32, i32
  }
  func.func @transform_1(%arg0: i32) -> (i32, i32) {
    %c0_i32 = arith.constant 0 : i32
    %c0_i32_0 = arith.constant 0 : i32
    %c0_i32_1 = arith.constant 0 : i32
    return %c0_i32, %c0_i32_0 : i32, i32
  }
}

module attributes {stable_mosaic.version = 11 : i64} {
  func.func @_conv3x3_relu_kernel(%arg0: i32, %arg1: i32, %arg2: memref<1x16x16x3xbf16, #tpu.memory_space<vmem>>, %arg3: memref<27x64xbf16, #tpu.memory_space<vmem>>, %arg4: memref<1x64xf32, #tpu.memory_space<vmem>>, %arg5: memref<1x16x16x64xbf16, #tpu.memory_space<vmem>>, %arg6: memref<18x18x3xbf16, #tpu.memory_space<vmem>>) attributes {dimension_semantics = [#tpu.dimension_semantics<parallel>, #tpu.dimension_semantics<parallel>], iteration_bounds = array<i64: 2, 1>, scalar_prefetch = 0 : i64, scratch_operands = 1 : i64, tpu.core_type = #tpu.core_type<tc>, window_params = [{transform_indices = @transform_0, window_bounds = array<i64: 1, 16, 16, 3>}, {pipeline_mode = #tpu.pipeline_mode<synchronous>, transform_indices = @transform_1, window_bounds = array<i64: 27, 64>}, {pipeline_mode = #tpu.pipeline_mode<synchronous>, transform_indices = @transform_2, window_bounds = array<i64: 1, 64>}, {transform_indices = @transform_3, window_bounds = array<i64: 1, 16, 16, 64>}]} {
    %cst = arith.constant 0.000000e+00 : bf16
    %0 = vector.broadcast %cst : bf16 to vector<18x1x3xbf16>
    %c0 = arith.constant 0 : index
    %c0_0 = arith.constant 0 : index
    %c0_1 = arith.constant 0 : index
    %1 = vector.load %arg6[%c0, %c0_0, %c0_1] : memref<18x18x3xbf16, #tpu.memory_space<vmem>>, vector<18x1x3xbf16>
    tpu.vector_store %arg6[%c0, %c0_0, %c0_1], %0 {strides = array<i32>} : memref<18x18x3xbf16, #tpu.memory_space<vmem>>, vector<18x1x3xbf16>,
    %c0_2 = arith.constant 0 : index
    %c17 = arith.constant 17 : index
    %c0_3 = arith.constant 0 : index
    %2 = vector.load %arg6[%c0_2, %c17, %c0_3] : memref<18x18x3xbf16, #tpu.memory_space<vmem>>, vector<18x1x3xbf16>
    tpu.vector_store %arg6[%c0_2, %c17, %c0_3], %0 {strides = array<i32>} : memref<18x18x3xbf16, #tpu.memory_space<vmem>>, vector<18x1x3xbf16>,
    %c16_i32 = arith.constant 16 : i32
    %3 = arith.muli %arg1, %c16_i32 : i32
    %c0_4 = arith.constant 0 : index
    %4 = arith.index_cast %3 : i32 to index
    %c0_5 = arith.constant 0 : index
    %c0_6 = arith.constant 0 : index
    %5 = vector.load %arg2[%c0_4, %4, %c0_5, %c0_6] : memref<1x16x16x3xbf16, #tpu.memory_space<vmem>>, vector<1x16x16x3xbf16>
    %6 = vector.shape_cast %5 : vector<1x16x16x3xbf16> to vector<16x16x3xbf16>
    %c1 = arith.constant 1 : index
    %c1_7 = arith.constant 1 : index
    %c0_8 = arith.constant 0 : index
    %7 = vector.load %arg6[%c1, %c1_7, %c0_8] : memref<18x18x3xbf16, #tpu.memory_space<vmem>>, vector<16x16x3xbf16>
    tpu.vector_store %arg6[%c1, %c1_7, %c0_8], %6 {strides = array<i32>} : memref<18x18x3xbf16, #tpu.memory_space<vmem>>, vector<16x16x3xbf16>,
    %c16_i32_9 = arith.constant 16 : i32
    %8 = arith.muli %arg1, %c16_i32_9 : i32
    %c1_i32 = arith.constant 1 : i32
    %9 = arith.subi %8, %c1_i32 : i32
    %c0_i32 = arith.constant 0 : i32
    %10 = arith.maxsi %9, %c0_i32 : i32
    %c0_10 = arith.constant 0 : index
    %11 = arith.index_cast %10 : i32 to index
    %c0_11 = arith.constant 0 : index
    %c0_12 = arith.constant 0 : index
    %12 = vector.load %arg2[%c0_10, %11, %c0_11, %c0_12] : memref<1x16x16x3xbf16, #tpu.memory_space<vmem>>, vector<1x1x16x3xbf16>
    %13 = vector.shape_cast %12 : vector<1x1x16x3xbf16> to vector<1x16x3xbf16>
    %c0_i32_13 = arith.constant 0 : i32
    %14 = arith.cmpi eq, %arg1, %c0_i32_13 : i32
    %cst_14 = arith.constant 0.000000e+00 : bf16
    %15 = vector.broadcast %cst_14 : bf16 to vector<1x16x3xbf16>
    %16 = arith.select %14, %15, %13 : vector<1x16x3xbf16>
    %c0_15 = arith.constant 0 : index
    %c1_16 = arith.constant 1 : index
    %c0_17 = arith.constant 0 : index
    %17 = vector.load %arg6[%c0_15, %c1_16, %c0_17] : memref<18x18x3xbf16, #tpu.memory_space<vmem>>, vector<1x16x3xbf16>
    tpu.vector_store %arg6[%c0_15, %c1_16, %c0_17], %16 {strides = array<i32>} : memref<18x18x3xbf16, #tpu.memory_space<vmem>>, vector<1x16x3xbf16>,
    %c16_i32_18 = arith.constant 16 : i32
    %18 = arith.muli %arg1, %c16_i32_18 : i32
    %c16_i32_19 = arith.constant 16 : i32
    %19 = arith.addi %18, %c16_i32_19 : i32
    %c15_i32 = arith.constant 15 : i32
    %20 = arith.minsi %19, %c15_i32 : i32
    %c0_20 = arith.constant 0 : index
    %21 = arith.index_cast %20 : i32 to index
    %c0_21 = arith.constant 0 : index
    %c0_22 = arith.constant 0 : index
    %22 = vector.load %arg2[%c0_20, %21, %c0_21, %c0_22] : memref<1x16x16x3xbf16, #tpu.memory_space<vmem>>, vector<1x1x16x3xbf16>
    %23 = vector.shape_cast %22 : vector<1x1x16x3xbf16> to vector<1x16x3xbf16>
    %c0_i32_23 = arith.constant 0 : i32
    %24 = arith.cmpi eq, %arg1, %c0_i32_23 : i32
    %cst_24 = arith.constant 0.000000e+00 : bf16
    %25 = vector.broadcast %cst_24 : bf16 to vector<1x16x3xbf16>
    %26 = arith.select %24, %25, %23 : vector<1x16x3xbf16>
    %c17_25 = arith.constant 17 : index
    %c1_26 = arith.constant 1 : index
    %c0_27 = arith.constant 0 : index
    %27 = vector.load %arg6[%c17_25, %c1_26, %c0_27] : memref<18x18x3xbf16, #tpu.memory_space<vmem>>, vector<1x16x3xbf16>
    tpu.vector_store %arg6[%c17_25, %c1_26, %c0_27], %26 {strides = array<i32>} : memref<18x18x3xbf16, #tpu.memory_space<vmem>>, vector<1x16x3xbf16>,
    %c0_28 = arith.constant 0 : index
    %c0_29 = arith.constant 0 : index
    %c0_30 = arith.constant 0 : index
    %28 = vector.load %arg6[%c0_28, %c0_29, %c0_30] : memref<18x18x3xbf16, #tpu.memory_space<vmem>>, vector<16x16x3xbf16>
    %c0_31 = arith.constant 0 : index
    %c1_32 = arith.constant 1 : index
    %c0_33 = arith.constant 0 : index
    %29 = vector.load %arg6[%c0_31, %c1_32, %c0_33] : memref<18x18x3xbf16, #tpu.memory_space<vmem>>, vector<16x16x3xbf16>
    %c0_34 = arith.constant 0 : index
    %c2 = arith.constant 2 : index
    %c0_35 = arith.constant 0 : index
    %30 = vector.load %arg6[%c0_34, %c2, %c0_35] : memref<18x18x3xbf16, #tpu.memory_space<vmem>>, vector<16x16x3xbf16>
    %c1_36 = arith.constant 1 : index
    %c0_37 = arith.constant 0 : index
    %c0_38 = arith.constant 0 : index
    %31 = vector.load %arg6[%c1_36, %c0_37, %c0_38] : memref<18x18x3xbf16, #tpu.memory_space<vmem>>, vector<16x16x3xbf16>
    %c1_39 = arith.constant 1 : index
    %c1_40 = arith.constant 1 : index
    %c0_41 = arith.constant 0 : index
    %32 = vector.load %arg6[%c1_39, %c1_40, %c0_41] : memref<18x18x3xbf16, #tpu.memory_space<vmem>>, vector<16x16x3xbf16>
    %c1_42 = arith.constant 1 : index
    %c2_43 = arith.constant 2 : index
    %c0_44 = arith.constant 0 : index
    %33 = vector.load %arg6[%c1_42, %c2_43, %c0_44] : memref<18x18x3xbf16, #tpu.memory_space<vmem>>, vector<16x16x3xbf16>
    %c2_45 = arith.constant 2 : index
    %c0_46 = arith.constant 0 : index
    %c0_47 = arith.constant 0 : index
    %34 = vector.load %arg6[%c2_45, %c0_46, %c0_47] : memref<18x18x3xbf16, #tpu.memory_space<vmem>>, vector<16x16x3xbf16>
    %c2_48 = arith.constant 2 : index
    %c1_49 = arith.constant 1 : index
    %c0_50 = arith.constant 0 : index
    %35 = vector.load %arg6[%c2_48, %c1_49, %c0_50] : memref<18x18x3xbf16, #tpu.memory_space<vmem>>, vector<16x16x3xbf16>
    %c2_51 = arith.constant 2 : index
    %c2_52 = arith.constant 2 : index
    %c0_53 = arith.constant 0 : index
    %36 = vector.load %arg6[%c2_51, %c2_52, %c0_53] : memref<18x18x3xbf16, #tpu.memory_space<vmem>>, vector<16x16x3xbf16>
    %37 = tpu.concatenate %28, %29, %30, %31, %32, %33, %34, %35, %36 in 2 : vector<16x16x3xbf16>, vector<16x16x3xbf16>, vector<16x16x3xbf16>, vector<16x16x3xbf16>, vector<16x16x3xbf16>, vector<16x16x3xbf16>, vector<16x16x3xbf16>, vector<16x16x3xbf16>, vector<16x16x3xbf16> -> vector<16x16x27xbf16>
    %38 = vector.shape_cast %37 : vector<16x16x27xbf16> to vector<256x27xbf16>
    %c0_54 = arith.constant 0 : index
    %c0_55 = arith.constant 0 : index
    %39 = vector.load %arg3[%c0_54, %c0_55] : memref<27x64xbf16, #tpu.memory_space<vmem>>, vector<27x64xbf16>
    %cst_56 = arith.constant dense<0.000000e+00> : vector<256x64xf32>
    %40 = tpu.matmul %38, %39, %cst_56 {dimension_numbers = #tpu.dot_dimension_numbers<[1], [0], [0], [1], [0, 0, 1, 1], [], []>} : vector<256x27xbf16>, vector<27x64xbf16>, vector<256x64xf32> -> vector<256x64xf32>
    %c0_57 = arith.constant 0 : index
    %c0_58 = arith.constant 0 : index
    %41 = vector.load %arg4[%c0_57, %c0_58] : memref<1x64xf32, #tpu.memory_space<vmem>>, vector<1x64xf32>
    %42 = vector.broadcast %41 : vector<1x64xf32> to vector<256x64xf32>
    %43 = arith.addf %40, %42 : vector<256x64xf32>
    %cst_59 = arith.constant 0.000000e+00 : f32
    %44 = vector.broadcast %cst_59 : f32 to vector<256x64xf32>
    %45 = arith.maximumf %43, %44 : vector<256x64xf32>
    %46 = vector.shape_cast %45 : vector<256x64xf32> to vector<16x16x64xf32>
    %47 = arith.truncf %46 : vector<16x16x64xf32> to vector<16x16x64xbf16>
    %c0_60 = arith.constant 0 : index
    %c0_61 = arith.constant 0 : index
    %c0_62 = arith.constant 0 : index
    %c0_63 = arith.constant 0 : index
    %48 = vector.load %arg5[%c0_60, %c0_61, %c0_62, %c0_63] : memref<1x16x16x64xbf16, #tpu.memory_space<vmem>>, vector<1x16x16x64xbf16>
    %49 = vector.shape_cast %48 : vector<1x16x16x64xbf16> to vector<16x16x64xbf16>
    %50 = vector.shape_cast %47 : vector<16x16x64xbf16> to vector<1x16x16x64xbf16>
    tpu.vector_store %arg5[%c0_60, %c0_61, %c0_62, %c0_63], %50 {strides = array<i32>} : memref<1x16x16x64xbf16, #tpu.memory_space<vmem>>, vector<1x16x16x64xbf16>,
    return
  }
  func.func @transform_0(%arg0: i32, %arg1: i32) -> (i32, i32, i32, i32) {
    %c0_i32 = arith.constant 0 : i32
    %c0_i32_0 = arith.constant 0 : i32
    %c0_i32_1 = arith.constant 0 : i32
    %c0_i32_2 = arith.constant 0 : i32
    return %arg0, %c0_i32, %c0_i32_0, %c0_i32_1 : i32, i32, i32, i32
  }
  func.func @transform_1(%arg0: i32, %arg1: i32) -> (i32, i32) {
    %c0_i32 = arith.constant 0 : i32
    %c0_i32_0 = arith.constant 0 : i32
    %c0_i32_1 = arith.constant 0 : i32
    return %c0_i32, %c0_i32_0 : i32, i32
  }
  func.func @transform_2(%arg0: i32, %arg1: i32) -> (i32, i32) {
    %c0_i32 = arith.constant 0 : i32
    %c0_i32_0 = arith.constant 0 : i32
    %c0_i32_1 = arith.constant 0 : i32
    return %c0_i32, %c0_i32_0 : i32, i32
  }
  func.func @transform_3(%arg0: i32, %arg1: i32) -> (i32, i32, i32, i32) {
    %c0_i32 = arith.constant 0 : i32
    %c0_i32_0 = arith.constant 0 : i32
    %c0_i32_1 = arith.constant 0 : i32
    return %arg0, %arg1, %c0_i32, %c0_i32_0 : i32, i32, i32, i32
  }
}

</mosaic_0001>

<llo_original>
// kernel: tpu_custom_call.1
$region0: #{tpu_custom_call.1}
  #allocation0 [shape = 'u32[]', space=smem, size = 0x4, offset = 0x4, fixed_abs, tag = 'smem constant byte address 0x4 - core index']
  #allocation1 [shape = 'u32[144,128]{1,0:T(1,128)}', space=vmem, size = 0x12000, scoped, tag = 'internal scratch']
  %s0 = inlined_call_operand.hbm [shape: f32[8,128], index: 0, kind: input, shape index: {}]
  %s1 = inlined_call_operand.hbm [shape: f32[8,128], index: 1, kind: output, shape index: {}]
  %s2 = sld [smem:[#allocation0]]
  $region18: #{tpu_custom_call.1} parent=0
    _
  %s4 = ssub.s32 1, %s2
  %s5 = scalar_select 0, %s4, %s2
  $region1: #{tpu_custom_call.1} parent=0
    #allocation2 [shape = 'u8[4096]{0}', space=vmem, size = 0x1000, scoped, tag = 'input window, operand 0, single buffered']
    #allocation3 [shape = 's32[1]{0}', space=sflag, size = 0x4, scoped, tag = 'scoped memory for tpu_custom_call.1']
    #allocation4 [shape = 's32[1]{0}', space=sflag, size = 0x4, scoped, tag = 'scoped memory for tpu_custom_call.1']
    #allocation5 [shape = 'u8[4096]{0}', space=vmem, size = 0x1000, scoped, tag = 'output window, operand 0, single buffered']
    %6 = vsyncpa [#allocation3], 0
    %7 = vsyncpa [#allocation4], 0
    // Predicated region
    $region2: #{tpu_custom_call.1} parent=1 // pred_check
      _
    $region3: #{tpu_custom_call.1} parent=1 // pred_check_branch
      %9 = sbr.rel (0) target = $region5
    $region4: #{tpu_custom_call.1} parent=1 // pred_region
      %s11 = ssub.s32 128, 128
      %12 = vsyncadd [#allocation3], %s11
      %s14 = sshll.u32 [#allocation2], 4
      %s15 = int_to_ptr.vmem [resolvable:$true] %s14
      %17 = dma.hbm_to_vmem [thread:$0]  %s0, 128, %s15, [#allocation3]
    $region5: #{tpu_custom_call.1} parent=1 // pred_fallthru
      _
    // Predicated region
    $region6: #{tpu_custom_call.1} parent=1 // pred_check
      _
    $region7: #{tpu_custom_call.1} parent=1 // pred_check_branch
      %19 = sbr.rel (0) target = $region9
    $region8: #{tpu_custom_call.1} parent=1 // pred_region
      %20 = dma.done [#allocation3], 128
    $region9: #{tpu_custom_call.1} parent=1 // pred_fallthru
      _
    %v21 = vld [vmem:[#allocation2] sm:$0xff]
    %v22 = vadd.f32 %v21, 1.0
    %23 = vst [vmem:[#allocation5] sm:$0xff] %v22
    // Predicated region
    $region10: #{tpu_custom_call.1} parent=1 // pred_check
      _
    $region11: #{tpu_custom_call.1} parent=1 // pred_check_branch
      %25 = sbr.rel (0) target = $region13
    $region12: #{tpu_custom_call.1} parent=1 // pred_region
      %s27 = ssub.s32 128, 128
      %28 = vsyncadd [#allocation4], %s27
      %s30 = sshll.u32 [#allocation5], 4
      %s31 = int_to_ptr.vmem [resolvable:$true] %s30
      %33 = dma.vmem_to_hbm [thread:$0]  %s31, 128, %s1, [#allocation4]
    $region13: #{tpu_custom_call.1} parent=1 // pred_fallthru
      _
    // Predicated region
    $region14: #{tpu_custom_call.1} parent=1 // pred_check
      _
    $region15: #{tpu_custom_call.1} parent=1 // pred_check_branch
      %35 = sbr.rel (0) target = $region17
    $region16: #{tpu_custom_call.1} parent=1 // pred_region
      %36 = dma.done [#allocation4], 128
    $region17: #{tpu_custom_call.1} parent=1 // pred_fallthru
      _
    %37 = vsyncpa [#allocation3], 1
    %38 = vsyncpa [#allocation4], 1

// kernel: tpu_custom_call.1
$region0: #{tpu_custom_call.1}
  #allocation0 [shape = 'u32[]', space=smem, size = 0x4, offset = 0x4, fixed_abs, tag = 'smem constant byte address 0x4 - core index']
  #allocation1 [shape = 'u32[144,128]{1,0:T(1,128)}', space=vmem, size = 0x12000, scoped, tag = 'internal scratch']
  #allocation2 [shape = 'bf16[18,18,3]{2,1,0:T(8,128)(2,1)}', space=vmem, size = 0x1b000, scoped, tag = 'scratch operand']
  %s0 = inlined_call_operand.vmem [shape: bf16[2,16,16,3], index: 0, kind: input, shape index: {}]
  %s1 = inlined_call_operand.vmem [shape: bf16[27,64], index: 1, kind: input, shape index: {}]
  %s2 = inlined_call_operand.vmem [shape: f32[1,64], index: 2, kind: input, shape index: {}]
  %s3 = inlined_call_operand.hbm [shape: bf16[2,16,16,64], index: 3, kind: output, shape index: {}]
  %s4 = sld [smem:[#allocation0]]
  $region45: #{tpu_custom_call.1} parent=0
    _
  %s6 = ssub.s32 1, %s4
  %s7 = scalar_select 0, %s6, %s4
  $region1: #{tpu_custom_call.1} parent=0
    #allocation3 [shape = 'u8[131072]{0}', space=vmem, size = 0x20000, scoped, tag = 'output window, operand 0']
    #allocation4 [shape = 's32[2]{0}', space=sflag, size = 0x8, scoped, tag = 'scoped memory for tpu_custom_call.1']
    %8 = vsyncpa [#allocation4], 0
    %s9 = scalar_lea.sflag [#allocation4], 1
    %10 = vsyncpa %s9, 0
    loop: start=0, step=1, limit=4
    $region2: #{tpu_custom_call.1} parent=1 // loop_pre_header
      _
    $region3: #{tpu_custom_call.1} parent=1 // loop_header
      %s12 = sphi 0, %s16
      %p13 = scmp.ge.s32.totalorder %s12, 4
      %s19 = sphi 0, %s31
      %s20 = sphi 0, %s27
      %s21 = sphi 0, %s19
      %s22 = sphi 0, %s20
      %s23 = sphi 0, %s21
      %s24 = sphi 0, %s22
      %s34 = sphi 0, %s36
      %s37 = sphi 0, %s34
      %s38 = sphi 0, %s37
      %s54 = sphi 0, %s38
      %s58 = sphi 0, %s58
      %s60 = sphi 0, %s58
      %s61 = sphi 0, %s60
      %s75 = sphi 0, %s61
      %s79 = sphi 0, %s79
      %s81 = sphi 0, %s79
      %s82 = sphi 0, %s81
      %s96 = sphi 0, %s82
      %s104 = sphi 0, %s106
      %s107 = sphi 0, %s104
      %s108 = sphi 0, %s107
      %s124 = sphi 0, %s108
    $region4: #{tpu_custom_call.1} parent=1 // loop_header_branch
      %15 = sbr.rel (%p13) target = $region8
    $region5: #{tpu_custom_call.1} parent=1 // loop_body
      %s17 = ssub.s32 %s12, 1
      %s18 = ssub.s32 %s12, 2
      %s25 = sadd.s32 1, %s20
      %p26 = scmp.ge.s32.totalorder %s25, 1
      %s27 = scalar_select %p26, 0, %s25
      %s28 = sadd.s32 1, %s19
      %s29 = scalar_select %p26, %s28, %s19
      %p30 = scmp.ge.s32.totalorder %s29, 2
      %s31 = scalar_select %p30, 0, %s29
      %s32 = ssub.s32 %s19, %s31
      %p33 = scmp.eq.s32.totalorder %s32, 0
      %s35 = sadd.s32 %s34, 1
      %s36 = scalar_select %p33, %s34, %s35
      %p39 = pneg %p33
      %p40 = scmp.eq.s32.totalorder %s12, 1
      %p41 = por %p39, %p40
      %p42 = scmp.ne.s32.totalorder %s34, %s37
      %p43 = scmp.eq.s32.totalorder %s12, 0
      %p44 = por %p42, %p43
      %p45 = scmp.ne.s32.totalorder %s34, %s37
      %p46 = scmp.eq.s32.totalorder %s17, 1
      %p47 = por %p45, %p46
      %p48 = scmp.ne.s32.totalorder %s37, %s38
      %p49 = scmp.eq.s32.totalorder %s17, 0
      %p50 = por %p48, %p49
      %p51 = scmp.ne.s32.totalorder %s37, %s38
      %p52 = scmp.eq.s32.totalorder %s18, 1
      %p53 = por %p51, %p52
      %p55 = scmp.ne.s32.totalorder %s38, %s54
      %p56 = scmp.eq.s32.totalorder %s18, 0
      %p57 = por %p55, %p56
      %s59 = sadd.s32 %s58, 1
      %p62 = scmp.eq.s32.totalorder %s12, 1
      %p63 = scmp.ne.s32.totalorder %s58, %s60
      %p64 = scmp.eq.s32.totalorder %s12, 0
      %p65 = por %p63, %p64
      %p66 = scmp.ne.s32.totalorder %s58, %s60
      %p67 = scmp.eq.s32.totalorder %s17, 1
      %p68 = por %p66, %p67
      %p69 = scmp.ne.s32.totalorder %s60, %s61
      %p70 = scmp.eq.s32.totalorder %s17, 0
      %p71 = por %p69, %p70
      %p72 = scmp.ne.s32.totalorder %s60, %s61
      %p73 = scmp.eq.s32.totalorder %s18, 1
      %p74 = por %p72, %p73
      %p76 = scmp.ne.s32.totalorder %s61, %s75
      %p77 = scmp.eq.s32.totalorder %s18, 0
      %p78 = por %p76, %p77
      %s80 = sadd.s32 %s79, 1
      %p83 = scmp.eq.s32.totalorder %s12, 1
      %p84 = scmp.ne.s32.totalorder %s79, %s81
      %p85 = scmp.eq.s32.totalorder %s12, 0
      %p86 = por %p84, %p85
      %p87 = scmp.ne.s32.totalorder %s79, %s81
      %p88 = scmp.eq.s32.totalorder %s17, 1
      %p89 = por %p87, %p88
      %p90 = scmp.ne.s32.totalorder %s81, %s82
      %p91 = scmp.eq.s32.totalorder %s17, 0
      %p92 = por %p90, %p91
      %p93 = scmp.ne.s32.totalorder %s81, %s82
      %p94 = scmp.eq.s32.totalorder %s18, 1
      %p95 = por %p93, %p94
      %p97 = scmp.ne.s32.totalorder %s82, %s96
      %p98 = scmp.eq.s32.totalorder %s18, 0
      %p99 = por %p97, %p98
      %s100 = ssub.s32 %s19, %s31
      %s101 = ssub.s32 %s20, %s27
      %s102 = sor.u32 %s100, %s101
      %p103 = scmp.eq.s32.totalorder %s102, 0
      %s105 = sadd.s32 %s104, 1
      %s106 = scalar_select %p103, %s104, %s105
      %p109 = pneg %p103
      %p110 = scmp.eq.s32.totalorder %s12, 1
      %p111 = por %p109, %p110
      %p112 = scmp.ne.s32.totalorder %s104, %s107
      %p113 = scmp.eq.s32.totalorder %s12, 0
      %p114 = por %p112, %p113
      %p115 = scmp.ne.s32.totalorder %s104, %s107
      %p116 = scmp.eq.s32.totalorder %s17, 1
      %p117 = por %p115, %p116
      %p118 = scmp.ne.s32.totalorder %s107, %s108
      %p119 = scmp.eq.s32.totalorder %s17, 0
      %p120 = por %p118, %p119
      %p121 = scmp.ne.s32.totalorder %s107, %s108
      %p122 = scmp.eq.s32.totalorder %s18, 1
      %p123 = por %p121, %p122
      %p125 = scmp.ne.s32.totalorder %s108, %s124
      %p126 = scmp.eq.s32.totalorder %s18, 0
      %p127 = por %p125, %p126
      %p128 = scmp.le.s32.totalorder 1, %s12
      %p129 = scmp.lt.s32.totalorder %s12, 3
      %p130 = pnand %p128, %p129
      %p131 = pneg %p130
      // Predicated region
      $region9: #{tpu_custom_call.1} parent=5 // pred_check
        _
      $region10: #{tpu_custom_call.1} parent=5 // pred_check_branch
        %133 = sbr.rel (%p130) target = $region12
      $region11: #{tpu_custom_call.1} parent=5 // pred_region
        %s134 = ssub.s32 %s12, 1
        // Predicated region
        $region13: #{tpu_custom_call.1} parent=11 // pred_check
          %p135 = pneg %p71
        $region14: #{tpu_custom_call.1} parent=11 // pred_check_branch
          %137 = sbr.rel (%p135) target = $region16
        $region15: #{tpu_custom_call.1} parent=11 // pred_region
          _
        $region16: #{tpu_custom_call.1} parent=11 // pred_fallthru
          _
        // Predicated region
        $region17: #{tpu_custom_call.1} parent=11 // pred_check
          %p138 = pneg %p92
        $region18: #{tpu_custom_call.1} parent=11 // pred_check_branch
          %140 = sbr.rel (%p138) target = $region20
        $region19: #{tpu_custom_call.1} parent=11 // pred_region
          _
        $region20: #{tpu_custom_call.1} parent=11 // pred_fallthru
          _
      $region12: #{tpu_custom_call.1} parent=5 // pred_fallthru
        _
      %p141 = scmp.lt.s32.totalorder %s12, 2
      // Predicated region
      $region21: #{tpu_custom_call.1} parent=5 // pred_check
        %p142 = pneg %p141
      $region22: #{tpu_custom_call.1} parent=5 // pred_check_branch
        %144 = sbr.rel (%p142) target = $region24
      $region23: #{tpu_custom_call.1} parent=5 // pred_region
        // Predicated region
        $region25: #{tpu_custom_call.1} parent=23 // pred_check
          %p145 = pneg %p44
        $region26: #{tpu_custom_call.1} parent=23 // pred_check_branch
          %147 = sbr.rel (%p145) target = $region28
        $region27: #{tpu_custom_call.1} parent=23 // pred_region
          %p148 = scmp.lt.s32.totalorder %s19, 1
          %s149 = scalar_select %p148, %s19, 1
          %s150 = smul.addr %s149, 32
          %s151 = smul.addr %s150, 4
          %s152 = scalar_lea.vmem %s0, %s151
        $region28: #{tpu_custom_call.1} parent=23 // pred_fallthru
          _
      $region24: #{tpu_custom_call.1} parent=5 // pred_fallthru
        _
      %p153 = scmp.le.s32.totalorder 1, %s12
      %p154 = scmp.lt.s32.totalorder %s12, 3
      %p155 = pnand %p153, %p154
      %p156 = pneg %p155
      // Predicated region
      $region29: #{tpu_custom_call.1} parent=5 // pred_check
        _
      $region30: #{tpu_custom_call.1} parent=5 // pred_check_branch
        %158 = sbr.rel (%p155) target = $region32
      $region31: #{tpu_custom_call.1} parent=5 // pred_region
        %s159 = ssub.s32 %s12, 1
        %p160 = scmp.lt.s32.totalorder %s21, 1
        %s161 = scalar_select %p160, %s21, 1
        %s162 = smul.addr %s161, 32
        %s163 = smul.addr %s162, 4
        %s164 = scalar_lea.vmem %s0, %s163
        %p165 = pneg %p50
        %p166 = pneg %p47
        %p167 = pneg %p71
        %p168 = pneg %p68
        %p169 = pneg %p92
        %p170 = pneg %p89
        %p171 = pneg %p120
        %p172 = pneg %p117
        %s173 = sand.u32 %s107, 1
        %s174 = scalar_lea.sflag [#allocation4], %s173
        %s175 = sand.u32 %s107, 1
        %s176 = smul.addr %s175, 128
        %s177 = scalar_lea.vmem [#allocation3], %s176
        %p178 = scmp.lt.s32.totalorder %s21, 1
        %s179 = scalar_select %p178, %s21, 1
        %s180 = smul.addr %s179, 32
        %s181 = smul.addr %s180, 4
        %s182 = scalar_lea.vmem %s0, %s181
        %s183 = smul.u32 16, %s22
        %vm185 = vcmask 16384
        %vm186 = vsmask.f32 256
        %vm187 = vmand %vm185, %vm186
        %v188 = vld [vmem:[#allocation2] sm:$0x1]
        %v189 = vsel %vm187, 0, %v188
        %190 = vst [vmem:[#allocation2] sm:$0x1] %v189
        %v191 = vld [vmem:[#allocation2 + $0xc] sm:$0x1]
        %v192 = vsel %vm187, 0, %v191
        %193 = vst [vmem:[#allocation2 + $0xc] sm:$0x1] %v192
        %v194 = vld [vmem:[#allocation2 + $0x18] sm:$0x1]
        %v195 = vsel %vm187, 0, %v194
        %196 = vst [vmem:[#allocation2 + $0x18] sm:$0x1] %v195
        %v197 = vld [vmem:[#allocation2 + $0x24] sm:$0x1]
        %v198 = vsel %vm187, 0, %v197
        %199 = vst [vmem:[#allocation2 + $0x24] sm:$0x1] %v198
        %v200 = vld [vmem:[#allocation2 + $0x30] sm:$0x1]
        %v201 = vsel %vm187, 0, %v200
        %202 = vst [vmem:[#allocation2 + $0x30] sm:$0x1] %v201
        %v203 = vld [vmem:[#allocation2 + $0x3c] sm:$0x1]
        %v204 = vsel %vm187, 0, %v203
        %205 = vst [vmem:[#allocation2 + $0x3c] sm:$0x1] %v204
        %v206 = vld [vmem:[#allocation2 + $0x48] sm:$0x1]
        %v207 = vsel %vm187, 0, %v206
        %208 = vst [vmem:[#allocation2 + $0x48] sm:$0x1] %v207
        %v209 = vld [vmem:[#allocation2 + $0x54] sm:$0x1]
        %v210 = vsel %vm187, 0, %v209
        %211 = vst [vmem:[#allocation2 + $0x54] sm:$0x1] %v210
        %v212 = vld [vmem:[#allocation2 + $0x60] sm:$0x1]
        %v213 = vsel %vm187, 0, %v212
        %214 = vst [vmem:[#allocation2 + $0x60] sm:$0x1] %v213
        %v215 = vld [vmem:[#allocation2 + $0x6c] sm:$0x1]
        %v216 = vsel %vm187, 0, %v215
        %217 = vst [vmem:[#allocation2 + $0x6c] sm:$0x1] %v216
        %v218 = vld [vmem:[#allocation2 + $0x78] sm:$0x1]
        %v219 = vsel %vm187, 0, %v218
        %220 = vst [vmem:[#allocation2 + $0x78] sm:$0x1] %v219
        %v221 = vld [vmem:[#allocation2 + $0x84] sm:$0x1]
        %v222 = vsel %vm187, 0, %v221
        %223 = vst [vmem:[#allocation2 + $0x84] sm:$0x1] %v222
        %v224 = vld [vmem:[#allocation2 + $0x90] sm:$0x1]
        %v225 = vsel %vm187, 0, %v224
        %226 = vst [vmem:[#allocation2 + $0x90] sm:$0x1] %v225
        %v227 = vld [vmem:[#allocation2 + $0x9c] sm:$0x1]
        %v228 = vsel %vm187, 0, %v227
        %229 = vst [vmem:[#allocation2 + $0x9c] sm:$0x1] %v228
        %v230 = vld [vmem:[#allocation2 + $0xa8] sm:$0x1]
        %v231 = vsel %vm187, 0, %v230
        %232 = vst [vmem:[#allocation2 + $0xa8] sm:$0x1] %v231
        %v233 = vld [vmem:[#allocation2 + $0xb4] sm:$0x1]
        %v234 = vsel %vm187, 0, %v233
        %235 = vst [vmem:[#allocation2 + $0xb4] sm:$0x1] %v234
        %v236 = vld [vmem:[#allocation2 + $0xc0] sm:$0x1]
        %v237 = vsel %vm187, 0, %v236
        %238 = vst [vmem:[#allocation2 + $0xc0] sm:$0x1] %v237
        %v239 = vld [vmem:[#allocation2 + $0xcc] sm:$0x1]
        %v240 = vsel %vm187, 0, %v239
        %241 = vst [vmem:[#allocation2 + $0xcc] sm:$0x1] %v240
        %vm242 = vsmask.f32 7938
        %vm243 = vmand %vm185, %vm242
        %v244 = vld [vmem:[#allocation2 + $0x8] sm:$0x1]
        %v245 = vsel %vm243, 0, %v244
        %246 = vst [vmem:[#allocation2 + $0x8] sm:$0x1] %v245
        %v247 = vld [vmem:[#allocation2 + $0x14] sm:$0x1]
        %v248 = vsel %vm243, 0, %v247
        %249 = vst [vmem:[#allocation2 + $0x14] sm:$0x1] %v248
        %v250 = vld [vmem:[#allocation2 + $0x20] sm:$0x1]
        %v251 = vsel %vm243, 0, %v250
        %252 = vst [vmem:[#allocation2 + $0x20] sm:$0x1] %v251
        %v253 = vld [vmem:[#allocation2 + $0x2c] sm:$0x1]
        %v254 = vsel %vm243, 0, %v253
        %255 = vst [vmem:[#allocation2 + $0x2c] sm:$0x1] %v254
        %v256 = vld [vmem:[#allocation2 + $0x38] sm:$0x1]
        %v257 = vsel %vm243, 0, %v256
        %258 = vst [vmem:[#allocation2 + $0x38] sm:$0x1] %v257
        %v259 = vld [vmem:[#allocation2 + $0x44] sm:$0x1]
        %v260 = vsel %vm243, 0, %v259
        %261 = vst [vmem:[#allocation2 + $0x44] sm:$0x1] %v260
        %v262 = vld [vmem:[#allocation2 + $0x50] sm:$0x1]
        %v263 = vsel %vm243, 0, %v262
        %264 = vst [vmem:[#allocation2 + $0x50] sm:$0x1] %v263
        %v265 = vld [vmem:[#allocation2 + $0x5c] sm:$0x1]
        %v266 = vsel %vm243, 0, %v265
        %267 = vst [vmem:[#allocation2 + $0x5c] sm:$0x1] %v266
        %v268 = vld [vmem:[#allocation2 + $0x68] sm:$0x1]
        %v269 = vsel %vm243, 0, %v268
        %270 = vst [vmem:[#allocation2 + $0x68] sm:$0x1] %v269
        %v271 = vld [vmem:[#allocation2 + $0x74] sm:$0x1]
        %v272 = vsel %vm243, 0, %v271
        %273 = vst [vmem:[#allocation2 + $0x74] sm:$0x1] %v272
        %v274 = vld [vmem:[#allocation2 + $0x80] sm:$0x1]
        %v275 = vsel %vm243, 0, %v274
        %276 = vst [vmem:[#allocation2 + $0x80] sm:$0x1] %v275
        %v277 = vld [vmem:[#allocation2 + $0x8c] sm:$0x1]
        %v278 = vsel %vm243, 0, %v277
        %279 = vst [vmem:[#allocation2 + $0x8c] sm:$0x1] %v278
        %v280 = vld [vmem:[#allocation2 + $0x98] sm:$0x1]
        %v281 = vsel %vm243, 0, %v280
        %282 = vst [vmem:[#allocation2 + $0x98] sm:$0x1] %v281
        %v283 = vld [vmem:[#allocation2 + $0xa4] sm:$0x1]
        %v284 = vsel %vm243, 0, %v283
        %285 = vst [vmem:[#allocation2 + $0xa4] sm:$0x1] %v284
        %v286 = vld [vmem:[#allocation2 + $0xb0] sm:$0x1]
        %v287 = vsel %vm243, 0, %v286
        %288 = vst [vmem:[#allocation2 + $0xb0] sm:$0x1] %v287
        %v289 = vld [vmem:[#allocation2 + $0xbc] sm:$0x1]
        %v290 = vsel %vm243, 0, %v289
        %291 = vst [vmem:[#allocation2 + $0xbc] sm:$0x1] %v290
        %v292 = vld [vmem:[#allocation2 + $0xc8] sm:$0x1]
        %v293 = vsel %vm243, 0, %v292
        %294 = vst [vmem:[#allocation2 + $0xc8] sm:$0x1] %v293
        %v295 = vld [vmem:[#allocation2 + $0xd4] sm:$0x1]
        %v296 = vsel %vm243, 0, %v295
        %297 = vst [vmem:[#allocation2 + $0xd4] sm:$0x1] %v296
        %s298 = smul.u32 %s22, 16
        %s299 = smul.u32 %s298, 2
        %s300 = smul.addr %s299, 4
        %s301 = scalar_lea.vmem %s182, %s300
        %v302 = vld [vmem:[%s301] sm:$0xf]
        %v303 = vld [vmem:[%s301 + $0x4] sm:$0xf]
        %v304 = vld [vmem:[%s301 + $0x8] sm:$0xf]
        %v305 = vld [vmem:[%s301 + $0xc] sm:$0xf]
        %v306 = vld [vmem:[%s301 + $0x10] sm:$0xf]
        %v307 = vld [vmem:[%s301 + $0x14] sm:$0xf]
        %v308 = vld [vmem:[%s301 + $0x18] sm:$0xf]
        %v309 = vld [vmem:[%s301 + $0x1c] sm:$0xf]
        %v310 = vld [vmem:[%s301 + $0x20] sm:$0xf]
        %v311 = vld [vmem:[%s301 + $0x24] sm:$0xf]
        %v312 = vld [vmem:[%s301 + $0x28] sm:$0xf]
        %v313 = vld [vmem:[%s301 + $0x2c] sm:$0xf]
        %v314 = vld [vmem:[%s301 + $0x30] sm:$0xf]
        %v315 = vld [vmem:[%s301 + $0x34] sm:$0xf]
        %v316 = vld [vmem:[%s301 + $0x38] sm:$0xf]
        %v317 = vld [vmem:[%s301 + $0x3c] sm:$0xf]
        %v318 = vld [vmem:[%s301 + $0x40] sm:$0xf]
        %v319 = vld [vmem:[%s301 + $0x44] sm:$0xf]
        %v320 = vld [vmem:[%s301 + $0x48] sm:$0xf]
        %v321 = vld [vmem:[%s301 + $0x4c] sm:$0xf]
        %v322 = vld [vmem:[%s301 + $0x50] sm:$0xf]
        %v323 = vld [vmem:[%s301 + $0x54] sm:$0xf]
        %v324 = vld [vmem:[%s301 + $0x58] sm:$0xf]
        %v325 = vld [vmem:[%s301 + $0x5c] sm:$0xf]
        %v326 = vld [vmem:[%s301 + $0x60] sm:$0xf]
        %v327 = vld [vmem:[%s301 + $0x64] sm:$0xf]
        %v328 = vld [vmem:[%s301 + $0x68] sm:$0xf]
        %v329 = vld [vmem:[%s301 + $0x6c] sm:$0xf]
        %v330 = vld [vmem:[%s301 + $0x70] sm:$0xf]
        %v331 = vld [vmem:[%s301 + $0x74] sm:$0xf]
        %v332 = vld [vmem:[%s301 + $0x78] sm:$0xf]
        %v333 = vld [vmem:[%s301 + $0x7c] sm:$0xf]
        %vm334 = vsmask.f32 4368
        %vm335 = vmor %vm186, %vm334
        %v337 = vshrl.u32 %v302, 16
        %v339 = vrot.slane %v337, 7
        %v340 = vshll.u32 %v302, 16
        %v342 = vor.u32 %v339, %v340
        %v343 = vrot.slane %v339, 4
        %v345 = vshrl.u32 %v303, 16
        %v347 = vrot.slane %v345, 7
        %v348 = vshll.u32 %v303, 16
        %v350 = vor.u32 %v347, %v348
        %v351 = vsel %vm335, %v343, %v350
        %v352 = vrot.slane %v347, 4
        %v354 = vshrl.u32 %v304, 16
        %v356 = vrot.slane %v354, 7
        %v357 = vshll.u32 %v304, 16
        %v359 = vor.u32 %v356, %v357
        %v360 = vrot.slane %v356, 4
        %v362 = vshrl.u32 %v305, 16
        %v364 = vrot.slane %v362, 7
        %v365 = vshll.u32 %v305, 16
        %v367 = vor.u32 %v364, %v365
        %v368 = vsel %vm335, %v360, %v367
        %v369 = vrot.slane %v364, 4
        %v371 = vshrl.u32 %v306, 16
        %v373 = vrot.slane %v371, 7
        %v374 = vshll.u32 %v306, 16
        %v376 = vor.u32 %v373, %v374
        %v377 = vrot.slane %v373, 4
        %v379 = vshrl.u32 %v307, 16
        %v381 = vrot.slane %v379, 7
        %v382 = vshll.u32 %v307, 16
        %v384 = vor.u32 %v381, %v382
        %v385 = vsel %vm335, %v377, %v384
        %v386 = vrot.slane %v381, 4
        %v388 = vshrl.u32 %v308, 16
        %v390 = vrot.slane %v388, 7
        %v391 = vshll.u32 %v308, 16
        %v393 = vor.u32 %v390, %v391
        %v394 = vrot.slane %v390, 4
        %v396 = vshrl.u32 %v309, 16
        %v398 = vrot.slane %v396, 7
        %v399 = vshll.u32 %v309, 16
        %v401 = vor.u32 %v398, %v399
        %v402 = vsel %vm335, %v394, %v401
        %v403 = vrot.slane %v398, 4
        %v405 = vshrl.u32 %v310, 16
        %v407 = vrot.slane %v405, 7
        %v408 = vshll.u32 %v310, 16
        %v410 = vor.u32 %v407, %v408
        %v411 = vrot.slane %v407, 4
        %v413 = vshrl.u32 %v311, 16
        %v415 = vrot.slane %v413, 7
        %v416 = vshll.u32 %v311, 16
        %v418 = vor.u32 %v415, %v416
        %v419 = vsel %vm335, %v411, %v418
        %v420 = vrot.slane %v415, 4
        %v422 = vshrl.u32 %v312, 16
        %v424 = vrot.slane %v422, 7
        %v425 = vshll.u32 %v312, 16
        %v427 = vor.u32 %v424, %v425
        %v428 = vrot.slane %v424, 4
        %v430 = vshrl.u32 %v313, 16
        %v432 = vrot.slane %v430, 7
        %v433 = vshll.u32 %v313, 16
        %v435 = vor.u32 %v432, %v433
        %v436 = vsel %vm335, %v428, %v435
        %v437 = vrot.slane %v432, 4
        %v439 = vshrl.u32 %v314, 16
        %v441 = vrot.slane %v439, 7
        %v442 = vshll.u32 %v314, 16
        %v444 = vor.u32 %v441, %v442
        %v445 = vrot.slane %v441, 4
        %v447 = vshrl.u32 %v315, 16
        %v449 = vrot.slane %v447, 7
        %v450 = vshll.u32 %v315, 16
        %v452 = vor.u32 %v449, %v450
        %v453 = vsel %vm335, %v445, %v452
        %v454 = vrot.slane %v449, 4
        %v456 = vshrl.u32 %v316, 16
        %v458 = vrot.slane %v456, 7
        %v459 = vshll.u32 %v316, 16
        %v461 = vor.u32 %v458, %v459
        %v462 = vrot.slane %v458, 4
        %v464 = vshrl.u32 %v317, 16
        %v466 = vrot.slane %v464, 7
        %v467 = vshll.u32 %v317, 16
        %v469 = vor.u32 %v466, %v467
        %v470 = vsel %vm335, %v462, %v469
        %v471 = vrot.slane %v466, 4
        %v473 = vshrl.u32 %v318, 16
        %v475 = vrot.slane %v473, 7
        %v476 = vshll.u32 %v318, 16
        %v478 = vor.u32 %v475, %v476
        %v479 = vrot.slane %v475, 4
        %v481 = vshrl.u32 %v319, 16
        %v483 = vrot.slane %v481, 7
        %v484 = vshll.u32 %v319, 16
        %v486 = vor.u32 %v483, %v484
        %v487 = vsel %vm335, %v479, %v486
        %v488 = vrot.slane %v483, 4
        %v490 = vshrl.u32 %v320, 16
        %v492 = vrot.slane %v490, 7
        %v493 = vshll.u32 %v320, 16
        %v495 = vor.u32 %v492, %v493
        %v496 = vrot.slane %v492, 4
        %v498 = vshrl.u32 %v321, 16
        %v500 = vrot.slane %v498, 7
        %v501 = vshll.u32 %v321, 16
        %v503 = vor.u32 %v500, %v501
        %v504 = vsel %vm335, %v496, %v503
        %v505 = vrot.slane %v500, 4
        %v507 = vshrl.u32 %v322, 16
        %v509 = vrot.slane %v507, 7
        %v510 = vshll.u32 %v322, 16
        %v512 = vor.u32 %v509, %v510
        %v513 = vrot.slane %v509, 4
        %v515 = vshrl.u32 %v323, 16
        %v517 = vrot.slane %v515, 7
        %v518 = vshll.u32 %v323, 16
        %v520 = vor.u32 %v517, %v518
        %v521 = vsel %vm335, %v513, %v520
        %v522 = vrot.slane %v517, 4
        %v524 = vshrl.u32 %v324, 16
        %v526 = vrot.slane %v524, 7
        %v527 = vshll.u32 %v324, 16
        %v529 = vor.u32 %v526, %v527
        %v530 = vrot.slane %v526, 4
        %v532 = vshrl.u32 %v325, 16
        %v534 = vrot.slane %v532, 7
        %v535 = vshll.u32 %v325, 16
        %v537 = vor.u32 %v534, %v535
        %v538 = vsel %vm335, %v530, %v537
        %v539 = vrot.slane %v534, 4
        %v541 = vshrl.u32 %v326, 16
        %v543 = vrot.slane %v541, 7
        %v544 = vshll.u32 %v326, 16
        %v546 = vor.u32 %v543, %v544
        %v547 = vrot.slane %v543, 4
        %v549 = vshrl.u32 %v327, 16
        %v551 = vrot.slane %v549, 7
        %v552 = vshll.u32 %v327, 16
        %v554 = vor.u32 %v551, %v552
        %v555 = vsel %vm335, %v547, %v554
        %v556 = vrot.slane %v551, 4
        %v558 = vshrl.u32 %v328, 16
        %v560 = vrot.slane %v558, 7
        %v561 = vshll.u32 %v328, 16
        %v563 = vor.u32 %v560, %v561
        %v564 = vrot.slane %v560, 4
        %v566 = vshrl.u32 %v329, 16
        %v568 = vrot.slane %v566, 7
        %v569 = vshll.u32 %v329, 16
        %v571 = vor.u32 %v568, %v569
        %v572 = vsel %vm335, %v564, %v571
        %v573 = vrot.slane %v568, 4
        %v575 = vshrl.u32 %v330, 16
        %v577 = vrot.slane %v575, 7
        %v578 = vshll.u32 %v330, 16
        %v580 = vor.u32 %v577, %v578
        %v581 = vrot.slane %v577, 4
        %v583 = vshrl.u32 %v331, 16
        %v585 = vrot.slane %v583, 7
        %v586 = vshll.u32 %v331, 16
        %v588 = vor.u32 %v585, %v586
        %v589 = vsel %vm335, %v581, %v588
        %v590 = vrot.slane %v585, 4
        %v592 = vshrl.u32 %v332, 16
        %v594 = vrot.slane %v592, 7
        %v595 = vshll.u32 %v332, 16
        %v597 = vor.u32 %v594, %v595
        %v598 = vrot.slane %v594, 4
        %v600 = vshrl.u32 %v333, 16
        %v602 = vrot.slane %v600, 7
        %v603 = vshll.u32 %v333, 16
        %v605 = vor.u32 %v602, %v603
        %v606 = vsel %vm335, %v598, %v605
        %v607 = vrot.slane %v602, 4
        %s656 = scalar_lea.vmem [#allocation2], 12
        %vm657 = vcmask 19456
        %vm658 = vmand %vm657, %vm242
        %v659 = vld [vmem:[%s656] sm:$0xf]
        %v660 = vsel %vm658, %v342, %v659
        %661 = vst [vmem:[%s656] sm:$0xf] %v660
        %vm662 = vcmask 19456
        %663 = vst.msk [vmem:[%s656 + $0x4] sm:$0xf] %vm662, %v351
        %v664 = vld [vmem:[%s656 + $0x8] sm:$0x1]
        %v665 = vsel %vm187, %v352, %v664
        %666 = vst [vmem:[%s656 + $0x8] sm:$0x1] %v665
        %v667 = vld [vmem:[%s656 + $0xc] sm:$0xf]
        %v668 = vsel %vm658, %v359, %v667
        %669 = vst [vmem:[%s656 + $0xc] sm:$0xf] %v668
        %670 = vst.msk [vmem:[%s656 + $0x10] sm:$0xf] %vm662, %v368
        %v671 = vld [vmem:[%s656 + $0x14] sm:$0x1]
        %v672 = vsel %vm187, %v369, %v671
        %673 = vst [vmem:[%s656 + $0x14] sm:$0x1] %v672
        %v674 = vld [vmem:[%s656 + $0x18] sm:$0xf]
        %v675 = vsel %vm658, %v376, %v674
        %676 = vst [vmem:[%s656 + $0x18] sm:$0xf] %v675
        %677 = vst.msk [vmem:[%s656 + $0x1c] sm:$0xf] %vm662, %v385
        %v678 = vld [vmem:[%s656 + $0x20] sm:$0x1]
        %v679 = vsel %vm187, %v386, %v678
        %680 = vst [vmem:[%s656 + $0x20] sm:$0x1] %v679
        %v681 = vld [vmem:[%s656 + $0x24] sm:$0xf]
        %v682 = vsel %vm658, %v393, %v681
        %683 = vst [vmem:[%s656 + $0x24] sm:$0xf] %v682
        %684 = vst.msk [vmem:[%s656 + $0x28] sm:$0xf] %vm662, %v402
        %v685 = vld [vmem:[%s656 + $0x2c] sm:$0x1]
        %v686 = vsel %vm187, %v403, %v685
        %687 = vst [vmem:[%s656 + $0x2c] sm:$0x1] %v686
        %v688 = vld [vmem:[%s656 + $0x30] sm:$0xf]
        %v689 = vsel %vm658, %v410, %v688
        %690 = vst [vmem:[%s656 + $0x30] sm:$0xf] %v689
        %691 = vst.msk [vmem:[%s656 + $0x34] sm:$0xf] %vm662, %v419
        %v692 = vld [vmem:[%s656 + $0x38] sm:$0x1]
        %v693 = vsel %vm187, %v420, %v692
        %694 = vst [vmem:[%s656 + $0x38] sm:$0x1] %v693
        %v695 = vld [vmem:[%s656 + $0x3c] sm:$0xf]
        %v696 = vsel %vm658, %v427, %v695
        %697 = vst [vmem:[%s656 + $0x3c] sm:$0xf] %v696
        %698 = vst.msk [vmem:[%s656 + $0x40] sm:$0xf] %vm662, %v436
        %v699 = vld [vmem:[%s656 + $0x44] sm:$0x1]
        %v700 = vsel %vm187, %v437, %v699
        %701 = vst [vmem:[%s656 + $0x44] sm:$0x1] %v700
        %v702 = vld [vmem:[%s656 + $0x48] sm:$0xf]
        %v703 = vsel %vm658, %v444, %v702
        %704 = vst [vmem:[%s656 + $0x48] sm:$0xf] %v703
        %705 = vst.msk [vmem:[%s656 + $0x4c] sm:$0xf] %vm662, %v453
        %v706 = vld [vmem:[%s656 + $0x50] sm:$0x1]
        %v707 = vsel %vm187, %v454, %v706
        %708 = vst [vmem:[%s656 + $0x50] sm:$0x1] %v707
        %v709 = vld [vmem:[%s656 + $0x54] sm:$0xf]
        %v710 = vsel %vm658, %v461, %v709
        %711 = vst [vmem:[%s656 + $0x54] sm:$0xf] %v710
        %712 = vst.msk [vmem:[%s656 + $0x58] sm:$0xf] %vm662, %v470
        %v713 = vld [vmem:[%s656 + $0x5c] sm:$0x1]
        %v714 = vsel %vm187, %v471, %v713
        %715 = vst [vmem:[%s656 + $0x5c] sm:$0x1] %v714
        %v716 = vld [vmem:[%s656 + $0x60] sm:$0xf]
        %v717 = vsel %vm658, %v478, %v716
        %718 = vst [vmem:[%s656 + $0x60] sm:$0xf] %v717
        %719 = vst.msk [vmem:[%s656 + $0x64] sm:$0xf] %vm662, %v487
        %v720 = vld [vmem:[%s656 + $0x68] sm:$0x1]
        %v721 = vsel %vm187, %v488, %v720
        %722 = vst [vmem:[%s656 + $0x68] sm:$0x1] %v721
        %v723 = vld [vmem:[%s656 + $0x6c] sm:$0xf]
        %v724 = vsel %vm658, %v495, %v723
        %725 = vst [vmem:[%s656 + $0x6c] sm:$0xf] %v724
        %726 = vst.msk [vmem:[%s656 + $0x70] sm:$0xf] %vm662, %v504
        %v727 = vld [vmem:[%s656 + $0x74] sm:$0x1]
        %v728 = vsel %vm187, %v505, %v727
        %729 = vst [vmem:[%s656 + $0x74] sm:$0x1] %v728
        %v730 = vld [vmem:[%s656 + $0x78] sm:$0xf]
        %v731 = vsel %vm658, %v512, %v730
        %732 = vst [vmem:[%s656 + $0x78] sm:$0xf] %v731
        %733 = vst.msk [vmem:[%s656 + $0x7c] sm:$0xf] %vm662, %v521
        %v734 = vld [vmem:[%s656 + $0x80] sm:$0x1]
        %v735 = vsel %vm187, %v522, %v734
        %736 = vst [vmem:[%s656 + $0x80] sm:$0x1] %v735
        %v737 = vld [vmem:[%s656 + $0x84] sm:$0xf]
        %v738 = vsel %vm658, %v529, %v737
        %739 = vst [vmem:[%s656 + $0x84] sm:$0xf] %v738
        %740 = vst.msk [vmem:[%s656 + $0x88] sm:$0xf] %vm662, %v538
        %v741 = vld [vmem:[%s656 + $0x8c] sm:$0x1]
        %v742 = vsel %vm187, %v539, %v741
        %743 = vst [vmem:[%s656 + $0x8c] sm:$0x1] %v742
        %v744 = vld [vmem:[%s656 + $0x90] sm:$0xf]
        %v745 = vsel %vm658, %v546, %v744
        %746 = vst [vmem:[%s656 + $0x90] sm:$0xf] %v745
        %747 = vst.msk [vmem:[%s656 + $0x94] sm:$0xf] %vm662, %v555
        %v748 = vld [vmem:[%s656 + $0x98] sm:$0x1]
        %v749 = vsel %vm187, %v556, %v748
        %750 = vst [vmem:[%s656 + $0x98] sm:$0x1] %v749
        %v751 = vld [vmem:[%s656 + $0x9c] sm:$0xf]
        %v752 = vsel %vm658, %v563, %v751
        %753 = vst [vmem:[%s656 + $0x9c] sm:$0xf] %v752
        %754 = vst.msk [vmem:[%s656 + $0xa0] sm:$0xf] %vm662, %v572
        %v755 = vld [vmem:[%s656 + $0xa4] sm:$0x1]
        %v756 = vsel %vm187, %v573, %v755
        %757 = vst [vmem:[%s656 + $0xa4] sm:$0x1] %v756
        %v758 = vld [vmem:[%s656 + $0xa8] sm:$0xf]
        %v759 = vsel %vm658, %v580, %v758
        %760 = vst [vmem:[%s656 + $0xa8] sm:$0xf] %v759
        %761 = vst.msk [vmem:[%s656 + $0xac] sm:$0xf] %vm662, %v589
        %v762 = vld [vmem:[%s656 + $0xb0] sm:$0x1]
        %v763 = vsel %vm187, %v590, %v762
        %764 = vst [vmem:[%s656 + $0xb0] sm:$0x1] %v763
        %v765 = vld [vmem:[%s656 + $0xb4] sm:$0xf]
        %v766 = vsel %vm658, %v597, %v765
        %767 = vst [vmem:[%s656 + $0xb4] sm:$0xf] %v766
        %768 = vst.msk [vmem:[%s656 + $0xb8] sm:$0xf] %vm662, %v606
        %v769 = vld [vmem:[%s656 + $0xbc] sm:$0x1]
        %v770 = vsel %vm187, %v607, %v769
        %771 = vst [vmem:[%s656 + $0xbc] sm:$0x1] %v770
        %s772 = ssub.s32 %s298, 1
        %p773 = scmp.gt.s32.totalorder %s772, 0
        %s774 = scalar_select %p773, %s772, 0
        %s775 = smul.u32 %s774, 2
        %s776 = smul.addr %s775, 4
        %s777 = scalar_lea.vmem %s182, %s776
        %v778 = vld [vmem:[%s777] sm:$0xf]
        %v779 = vld [vmem:[%s777 + $0x4] sm:$0xf]
        %p780 = scmp.eq.s32.totalorder %s22, 0
        %s781 = scalar_select %p780, 1, 0
        %v782 = vstv %s781
        %vm783 = vcmp.eq.s32.totalorder %v782, 1
        %v784 = vsel %vm783, 0, %v778
        %v785 = vsel %vm783, 0, %v779
        %v787 = vshrl.u32 %v784, 16
        %v789 = vrot.slane %v787, 7
        %v790 = vshll.u32 %v784, 16
        %v792 = vor.u32 %v789, %v790
        %v793 = vrot.slane %v789, 4
        %v795 = vshrl.u32 %v785, 16
        %v797 = vrot.slane %v795, 7
        %v798 = vshll.u32 %v785, 16
        %v800 = vor.u32 %v797, %v798
        %v801 = vsel %vm335, %v793, %v800
        %v802 = vrot.slane %v797, 4
        %v806 = vld [vmem:[#allocation2] sm:$0xf]
        %v807 = vsel %vm658, %v792, %v806
        %808 = vst [vmem:[#allocation2] sm:$0xf] %v807
        %809 = vst.msk [vmem:[#allocation2 + $0x4] sm:$0xf] %vm662, %v801
        %v810 = vld [vmem:[#allocation2 + $0x8] sm:$0x1]
        %v811 = vsel %vm187, %v802, %v810
        %812 = vst [vmem:[#allocation2 + $0x8] sm:$0x1] %v811
        %s813 = sadd.s32 %s298, 16
        %p814 = scmp.lt.s32.totalorder %s813, 15
        %s815 = scalar_select %p814, %s813, 15
        %s816 = smul.u32 %s815, 2
        %s817 = smul.addr %s816, 4
        %s818 = scalar_lea.vmem %s182, %s817
        %v819 = vld [vmem:[%s818] sm:$0xf]
        %v820 = vld [vmem:[%s818 + $0x4] sm:$0xf]
        %v821 = vsel %vm783, 0, %v819
        %v822 = vsel %vm783, 0, %v820
        %v824 = vshrl.u32 %v821, 16
        %v826 = vrot.slane %v824, 7
        %v827 = vshll.u32 %v821, 16
        %v829 = vor.u32 %v826, %v827
        %v830 = vrot.slane %v826, 4
        %v832 = vshrl.u32 %v822, 16
        %v834 = vrot.slane %v832, 7
        %v835 = vshll.u32 %v822, 16
        %v837 = vor.u32 %v834, %v835
        %v838 = vsel %vm335, %v830, %v837
        %v839 = vrot.slane %v834, 4
        %s843 = scalar_lea.vmem [#allocation2], 204
        %v844 = vld [vmem:[%s843] sm:$0xf]
        %v845 = vsel %vm658, %v829, %v844
        %846 = vst [vmem:[%s843] sm:$0xf] %v845
        %847 = vst.msk [vmem:[%s843 + $0x4] sm:$0xf] %vm662, %v838
        %v848 = vld [vmem:[%s843 + $0x8] sm:$0x1]
        %v849 = vsel %vm187, %v839, %v848
        %850 = vst [vmem:[%s843 + $0x8] sm:$0x1] %v849
        %v851 = vld [vmem:[#allocation2] sm:$0xf]
        %v852 = vld [vmem:[#allocation2 + $0x4] sm:$0xf]
        %v853 = vld [vmem:[#allocation2 + $0xc] sm:$0xf]
        %v854 = vld [vmem:[#allocation2 + $0x10] sm:$0xf]
        %v855 = vld [vmem:[#allocation2 + $0x18] sm:$0xf]
        %v856 = vld [vmem:[#allocation2 + $0x1c] sm:$0xf]
        %v857 = vld [vmem:[#allocation2 + $0x24] sm:$0xf]
        %v858 = vld [vmem:[#allocation2 + $0x28] sm:$0xf]
        %v859 = vld [vmem:[#allocation2 + $0x30] sm:$0xf]
        %v860 = vld [vmem:[#allocation2 + $0x34] sm:$0xf]
        %v861 = vld [vmem:[#allocation2 + $0x3c] sm:$0xf]
        %v862 = vld [vmem:[#allocation2 + $0x40] sm:$0xf]
        %v863 = vld [vmem:[#allocation2 + $0x48] sm:$0xf]
        %v864 = vld [vmem:[#allocation2 + $0x4c] sm:$0xf]
        %v865 = vld [vmem:[#allocation2 + $0x54] sm:$0xf]
        %v866 = vld [vmem:[#allocation2 + $0x58] sm:$0xf]
        %v867 = vld [vmem:[#allocation2 + $0x60] sm:$0xf]
        %v868 = vld [vmem:[#allocation2 + $0x64] sm:$0xf]
        %v869 = vld [vmem:[#allocation2 + $0x6c] sm:$0xf]
        %v870 = vld [vmem:[#allocation2 + $0x70] sm:$0xf]
        %v871 = vld [vmem:[#allocation2 + $0x78] sm:$0xf]
        %v872 = vld [vmem:[#allocation2 + $0x7c] sm:$0xf]
        %v873 = vld [vmem:[#allocation2 + $0x84] sm:$0xf]
        %v874 = vld [vmem:[#allocation2 + $0x88] sm:$0xf]
        %v875 = vld [vmem:[#allocation2 + $0x90] sm:$0xf]
        %v876 = vld [vmem:[#allocation2 + $0x94] sm:$0xf]
        %v877 = vld [vmem:[#allocation2 + $0x9c] sm:$0xf]
        %v878 = vld [vmem:[#allocation2 + $0xa0] sm:$0xf]
        %v879 = vld [vmem:[#allocation2 + $0xa8] sm:$0xf]
        %v880 = vld [vmem:[#allocation2 + $0xac] sm:$0xf]
        %v881 = vld [vmem:[#allocation2 + $0xb4] sm:$0xf]
        %v882 = vld [vmem:[#allocation2 + $0xb8] sm:$0xf]
        %v883 = vld [vmem:[#allocation2 + $0x8] sm:$0x1]
        %v884 = vld [vmem:[#allocation2 + $0x14] sm:$0x1]
        %v885 = vld [vmem:[#allocation2 + $0x20] sm:$0x1]
        %v886 = vld [vmem:[#allocation2 + $0x2c] sm:$0x1]
        %v887 = vld [vmem:[#allocation2 + $0x38] sm:$0x1]
        %v888 = vld [vmem:[#allocation2 + $0x44] sm:$0x1]
        %v889 = vld [vmem:[#allocation2 + $0x50] sm:$0x1]
        %v890 = vld [vmem:[#allocation2 + $0x5c] sm:$0x1]
        %v891 = vld [vmem:[#allocation2 + $0x68] sm:$0x1]
        %v892 = vld [vmem:[#allocation2 + $0x74] sm:$0x1]
        %v893 = vld [vmem:[#allocation2 + $0x80] sm:$0x1]
        %v894 = vld [vmem:[#allocation2 + $0x8c] sm:$0x1]
        %v895 = vld [vmem:[#allocation2 + $0x98] sm:$0x1]
        %v896 = vld [vmem:[#allocation2 + $0xa4] sm:$0x1]
        %v897 = vld [vmem:[#allocation2 + $0xb0] sm:$0x1]
        %v898 = vld [vmem:[#allocation2 + $0xbc] sm:$0x1]
        %v899 = vld [vmem:[#allocation2] sm:$0xe]
        %v900 = vld [vmem:[#allocation2 + $0xc] sm:$0xe]
        %v901 = vld [vmem:[#allocation2 + $0x18] sm:$0xe]
        %v902 = vld [vmem:[#allocation2 + $0x24] sm:$0xe]
        %v903 = vld [vmem:[#allocation2 + $0x30] sm:$0xe]
        %v904 = vld [vmem:[#allocation2 + $0x3c] sm:$0xe]
        %v905 = vld [vmem:[#allocation2 + $0x48] sm:$0xe]
        %v906 = vld [vmem:[#allocation2 + $0x54] sm:$0xe]
        %v907 = vld [vmem:[#allocation2 + $0x60] sm:$0xe]
        %v908 = vld [vmem:[#allocation2 + $0x6c] sm:$0xe]
        %v909 = vld [vmem:[#allocation2 + $0x78] sm:$0xe]
        %v910 = vld [vmem:[#allocation2 + $0x84] sm:$0xe]
        %v911 = vld [vmem:[#allocation2 + $0x90] sm:$0xe]
        %v912 = vld [vmem:[#allocation2 + $0x9c] sm:$0xe]
        %v913 = vld [vmem:[#allocation2 + $0xa8] sm:$0xe]
        %v914 = vld [vmem:[#allocation2 + $0xb4] sm:$0xe]
        %v915 = vld [vmem:[%s656] sm:$0xf]
        %v916 = vld [vmem:[%s656 + $0x4] sm:$0xf]
        %v917 = vld [vmem:[%s656 + $0xc] sm:$0xf]
        %v918 = vld [vmem:[%s656 + $0x10] sm:$0xf]
        %v919 = vld [vmem:[%s656 + $0x18] sm:$0xf]
        %v920 = vld [vmem:[%s656 + $0x1c] sm:$0xf]
        %v921 = vld [vmem:[%s656 + $0x24] sm:$0xf]
        %v922 = vld [vmem:[%s656 + $0x28] sm:$0xf]
        %v923 = vld [vmem:[%s656 + $0x30] sm:$0xf]
        %v924 = vld [vmem:[%s656 + $0x34] sm:$0xf]
        %v925 = vld [vmem:[%s656 + $0x3c] sm:$0xf]
        %v926 = vld [vmem:[%s656 + $0x40] sm:$0xf]
        %v927 = vld [vmem:[%s656 + $0x48] sm:$0xf]
        %v928 = vld [vmem:[%s656 + $0x4c] sm:$0xf]
        %v929 = vld [vmem:[%s656 + $0x54] sm:$0xf]
        %v930 = vld [vmem:[%s656 + $0x58] sm:$0xf]
        %v931 = vld [vmem:[%s656 + $0x60] sm:$0xf]
        %v932 = vld [vmem:[%s656 + $0x64] sm:$0xf]
        %v933 = vld [vmem:[%s656 + $0x6c] sm:$0xf]
        %v934 = vld [vmem:[%s656 + $0x70] sm:$0xf]
        %v935 = vld [vmem:[%s656 + $0x78] sm:$0xf]
        %v936 = vld [vmem:[%s656 + $0x7c] sm:$0xf]
        %v937 = vld [vmem:[%s656 + $0x84] sm:$0xf]
        %v938 = vld [vmem:[%s656 + $0x88] sm:$0xf]
        %v939 = vld [vmem:[%s656 + $0x90] sm:$0xf]
        %v940 = vld [vmem:[%s656 + $0x94] sm:$0xf]
        %v941 = vld [vmem:[%s656 + $0x9c] sm:$0xf]
        %v942 = vld [vmem:[%s656 + $0xa0] sm:$0xf]
        %v943 = vld [vmem:[%s656 + $0xa8] sm:$0xf]
        %v944 = vld [vmem:[%s656 + $0xac] sm:$0xf]
        %v945 = vld [vmem:[%s656 + $0xb4] sm:$0xf]
        %v946 = vld [vmem:[%s656 + $0xb8] sm:$0xf]
        %v947 = vld [vmem:[%s656 + $0x8] sm:$0x1]
        %v948 = vld [vmem:[%s656 + $0x14] sm:$0x1]
        %v949 = vld [vmem:[%s656 + $0x20] sm:$0x1]
        %v950 = vld [vmem:[%s656 + $0x2c] sm:$0x1]
        %v951 = vld [vmem:[%s656 + $0x38] sm:$0x1]
        %v952 = vld [vmem:[%s656 + $0x44] sm:$0x1]
        %v953 = vld [vmem:[%s656 + $0x50] sm:$0x1]
        %v954 = vld [vmem:[%s656 + $0x5c] sm:$0x1]
        %v955 = vld [vmem:[%s656 + $0x68] sm:$0x1]
        %v956 = vld [vmem:[%s656 + $0x74] sm:$0x1]
        %v957 = vld [vmem:[%s656 + $0x80] sm:$0x1]
        %v958 = vld [vmem:[%s656 + $0x8c] sm:$0x1]
        %v959 = vld [vmem:[%s656 + $0x98] sm:$0x1]
        %v960 = vld [vmem:[%s656 + $0xa4] sm:$0x1]
        %v961 = vld [vmem:[%s656 + $0xb0] sm:$0x1]
        %v962 = vld [vmem:[%s656 + $0xbc] sm:$0x1]
        %v963 = vld [vmem:[%s656] sm:$0xe]
        %v964 = vld [vmem:[%s656 + $0xc] sm:$0xe]
        %v965 = vld [vmem:[%s656 + $0x18] sm:$0xe]
        %v966 = vld [vmem:[%s656 + $0x24] sm:$0xe]
        %v967 = vld [vmem:[%s656 + $0x30] sm:$0xe]
        %v968 = vld [vmem:[%s656 + $0x3c] sm:$0xe]
        %v969 = vld [vmem:[%s656 + $0x48] sm:$0xe]
        %v970 = vld [vmem:[%s656 + $0x54] sm:$0xe]
        %v971 = vld [vmem:[%s656 + $0x60] sm:$0xe]
        %v972 = vld [vmem:[%s656 + $0x6c] sm:$0xe]
        %v973 = vld [vmem:[%s656 + $0x78] sm:$0xe]
        %v974 = vld [vmem:[%s656 + $0x84] sm:$0xe]
        %v975 = vld [vmem:[%s656 + $0x90] sm:$0xe]
        %v976 = vld [vmem:[%s656 + $0x9c] sm:$0xe]
        %v977 = vld [vmem:[%s656 + $0xa8] sm:$0xe]
        %v978 = vld [vmem:[%s656 + $0xb4] sm:$0xe]
        %s979 = scalar_lea.vmem [#allocation2], 24
        %v980 = vld [vmem:[%s979] sm:$0xf]
        %v981 = vld [vmem:[%s979 + $0x4] sm:$0xf]
        %v982 = vld [vmem:[%s979 + $0xc] sm:$0xf]
        %v983 = vld [vmem:[%s979 + $0x10] sm:$0xf]
        %v984 = vld [vmem:[%s979 + $0x18] sm:$0xf]
        %v985 = vld [vmem:[%s979 + $0x1c] sm:$0xf]
        %v986 = vld [vmem:[%s979 + $0x24] sm:$0xf]
        %v987 = vld [vmem:[%s979 + $0x28] sm:$0xf]
        %v988 = vld [vmem:[%s979 + $0x30] sm:$0xf]
        %v989 = vld [vmem:[%s979 + $0x34] sm:$0xf]
        %v990 = vld [vmem:[%s979 + $0x3c] sm:$0xf]
        %v991 = vld [vmem:[%s979 + $0x40] sm:$0xf]
        %v992 = vld [vmem:[%s979 + $0x48] sm:$0xf]
        %v993 = vld [vmem:[%s979 + $0x4c] sm:$0xf]
        %v994 = vld [vmem:[%s979 + $0x54] sm:$0xf]
        %v995 = vld [vmem:[%s979 + $0x58] sm:$0xf]
        %v996 = vld [vmem:[%s979 + $0x60] sm:$0xf]
        %v997 = vld [vmem:[%s979 + $0x64] sm:$0xf]
        %v998 = vld [vmem:[%s979 + $0x6c] sm:$0xf]
        %v999 = vld [vmem:[%s979 + $0x70] sm:$0xf]
        %v1000 = vld [vmem:[%s979 + $0x78] sm:$0xf]
        %v1001 = vld [vmem:[%s979 + $0x7c] sm:$0xf]
        %v1002 = vld [vmem:[%s979 + $0x84] sm:$0xf]
        %v1003 = vld [vmem:[%s979 + $0x88] sm:$0xf]
        %v1004 = vld [vmem:[%s979 + $0x90] sm:$0xf]
        %v1005 = vld [vmem:[%s979 + $0x94] sm:$0xf]
        %v1006 = vld [vmem:[%s979 + $0x9c] sm:$0xf]
        %v1007 = vld [vmem:[%s979 + $0xa0] sm:$0xf]
        %v1008 = vld [vmem:[%s979 + $0xa8] sm:$0xf]
        %v1009 = vld [vmem:[%s979 + $0xac] sm:$0xf]
        %v1010 = vld [vmem:[%s979 + $0xb4] sm:$0xf]
        %v1011 = vld [vmem:[%s979 + $0xb8] sm:$0xf]
        %v1012 = vld [vmem:[%s979 + $0x8] sm:$0x1]
        %v1013 = vld [vmem:[%s979 + $0x14] sm:$0x1]
        %v1014 = vld [vmem:[%s979 + $0x20] sm:$0x1]
        %v1015 = vld [vmem:[%s979 + $0x2c] sm:$0x1]
        %v1016 = vld [vmem:[%s979 + $0x38] sm:$0x1]
        %v1017 = vld [vmem:[%s979 + $0x44] sm:$0x1]
        %v1018 = vld [vmem:[%s979 + $0x50] sm:$0x1]
        %v1019 = vld [vmem:[%s979 + $0x5c] sm:$0x1]
        %v1020 = vld [vmem:[%s979 + $0x68] sm:$0x1]
        %v1021 = vld [vmem:[%s979 + $0x74] sm:$0x1]
        %v1022 = vld [vmem:[%s979 + $0x80] sm:$0x1]
        %v1023 = vld [vmem:[%s979 + $0x8c] sm:$0x1]
        %v1024 = vld [vmem:[%s979 + $0x98] sm:$0x1]
        %v1025 = vld [vmem:[%s979 + $0xa4] sm:$0x1]
        %v1026 = vld [vmem:[%s979 + $0xb0] sm:$0x1]
        %v1027 = vld [vmem:[%s979 + $0xbc] sm:$0x1]
        %v1028 = vld [vmem:[%s979] sm:$0xe]
        %v1029 = vld [vmem:[%s979 + $0xc] sm:$0xe]
        %v1030 = vld [vmem:[%s979 + $0x18] sm:$0xe]
        %v1031 = vld [vmem:[%s979 + $0x24] sm:$0xe]
        %v1032 = vld [vmem:[%s979 + $0x30] sm:$0xe]
        %v1033 = vld [vmem:[%s979 + $0x3c] sm:$0xe]
        %v1034 = vld [vmem:[%s979 + $0x48] sm:$0xe]
        %v1035 = vld [vmem:[%s979 + $0x54] sm:$0xe]
        %v1036 = vld [vmem:[%s979 + $0x60] sm:$0xe]
        %v1037 = vld [vmem:[%s979 + $0x6c] sm:$0xe]
        %v1038 = vld [vmem:[%s979 + $0x78] sm:$0xe]
        %v1039 = vld [vmem:[%s979 + $0x84] sm:$0xe]
        %v1040 = vld [vmem:[%s979 + $0x90] sm:$0xe]
        %v1041 = vld [vmem:[%s979 + $0x9c] sm:$0xe]
        %v1042 = vld [vmem:[%s979 + $0xa8] sm:$0xe]
        %v1043 = vld [vmem:[%s979 + $0xb4] sm:$0xe]
        %v1076 = vunpack.c.l.b16 %v851
        %v1077 = vunpack.c.l.b16 %v852
        %v1078 = vunpack.c.l.b16 %v853
        %v1079 = vunpack.c.l.b16 %v854
        %v1080 = vunpack.c.l.b16 %v855
        %v1081 = vunpack.c.l.b16 %v856
        %v1082 = vunpack.c.l.b16 %v857
        %v1083 = vunpack.c.l.b16 %v858
        %v1084 = vunpack.c.l.b16 %v859
        %v1085 = vunpack.c.l.b16 %v860
        %v1086 = vunpack.c.l.b16 %v861
        %v1087 = vunpack.c.l.b16 %v862
        %v1088 = vunpack.c.l.b16 %v863
        %v1089 = vunpack.c.l.b16 %v864
        %v1090 = vunpack.c.l.b16 %v865
        %v1091 = vunpack.c.l.b16 %v866
        %v1092 = vunpack.c.l.b16 %v867
        %v1093 = vunpack.c.l.b16 %v868
        %v1094 = vunpack.c.l.b16 %v869
        %v1095 = vunpack.c.l.b16 %v870
        %v1096 = vunpack.c.l.b16 %v871
        %v1097 = vunpack.c.l.b16 %v872
        %v1098 = vunpack.c.l.b16 %v873
        %v1099 = vunpack.c.l.b16 %v874
        %v1100 = vunpack.c.l.b16 %v875
        %v1101 = vunpack.c.l.b16 %v876
        %v1102 = vunpack.c.l.b16 %v877
        %v1103 = vunpack.c.l.b16 %v878
        %v1104 = vunpack.c.l.b16 %v879
        %v1105 = vunpack.c.l.b16 %v880
        %v1106 = vunpack.c.l.b16 %v881
        %v1107 = vunpack.c.l.b16 %v882
        %v1108 = vpack.c.b16 %v1077, %v1076
        %v1109 = vpack.c.b16 %v1079, %v1078
        %v1110 = vpack.c.b16 %v1081, %v1080
        %v1111 = vpack.c.b16 %v1083, %v1082
        %v1112 = vpack.c.b16 %v1085, %v1084
        %v1113 = vpack.c.b16 %v1087, %v1086
        %v1114 = vpack.c.b16 %v1089, %v1088
        %v1115 = vpack.c.b16 %v1091, %v1090
        %v1116 = vpack.c.b16 %v1093, %v1092
        %v1117 = vpack.c.b16 %v1095, %v1094
        %v1118 = vpack.c.b16 %v1097, %v1096
        %v1119 = vpack.c.b16 %v1099, %v1098
        %v1120 = vpack.c.b16 %v1101, %v1100
        %v1121 = vpack.c.b16 %v1103, %v1102
        %v1122 = vpack.c.b16 %v1105, %v1104
        %v1123 = vpack.c.b16 %v1107, %v1106
        %v1140 = vunpack.c.l.b16 %v883
        %v1141 = vunpack.c.l.b16 %v884
        %v1142 = vunpack.c.l.b16 %v885
        %v1143 = vunpack.c.l.b16 %v886
        %v1144 = vunpack.c.l.b16 %v887
        %v1145 = vunpack.c.l.b16 %v888
        %v1146 = vunpack.c.l.b16 %v889
        %v1147 = vunpack.c.l.b16 %v890
        %v1148 = vunpack.c.l.b16 %v891
        %v1149 = vunpack.c.l.b16 %v892
        %v1150 = vunpack.c.l.b16 %v893
        %v1151 = vunpack.c.l.b16 %v894
        %v1152 = vunpack.c.l.b16 %v895
        %v1153 = vunpack.c.l.b16 %v896
        %v1154 = vunpack.c.l.b16 %v897
        %v1155 = vunpack.c.l.b16 %v898
        %v1156 = vpack.c.b16 %v1140, %v1140
        %v1157 = vpack.c.b16 %v1141, %v1141
        %v1158 = vpack.c.b16 %v1142, %v1142
        %v1159 = vpack.c.b16 %v1143, %v1143
        %v1160 = vpack.c.b16 %v1144, %v1144
        %v1161 = vpack.c.b16 %v1145, %v1145
        %v1162 = vpack.c.b16 %v1146, %v1146
        %v1163 = vpack.c.b16 %v1147, %v1147
        %v1164 = vpack.c.b16 %v1148, %v1148
        %v1165 = vpack.c.b16 %v1149, %v1149
        %v1166 = vpack.c.b16 %v1150, %v1150
        %v1167 = vpack.c.b16 %v1151, %v1151
        %v1168 = vpack.c.b16 %v1152, %v1152
        %v1169 = vpack.c.b16 %v1153, %v1153
        %v1170 = vpack.c.b16 %v1154, %v1154
        %v1171 = vpack.c.b16 %v1155, %v1155
        %vm1172 = vsmask.f32 7424
        %v1174 = vshrl.u32 %v1108, 16
        %v1176 = vshll.u32 %v1108, 16
        %v1178 = vrot.slane %v1176, 1
        %v1179 = vor.u32 %v1174, %v1178
        %v1181 = vshll.u32 %v1156, 16
        %v1183 = vrot.slane %v1181, 1
        %v1184 = vsel %vm1172, %v1179, %v1183
        %v1186 = vshrl.u32 %v1109, 16
        %v1188 = vshll.u32 %v1109, 16
        %v1190 = vrot.slane %v1188, 1
        %v1191 = vor.u32 %v1186, %v1190
        %v1193 = vshll.u32 %v1157, 16
        %v1195 = vrot.slane %v1193, 1
        %v1196 = vsel %vm1172, %v1191, %v1195
        %v1198 = vshrl.u32 %v1110, 16
        %v1200 = vshll.u32 %v1110, 16
        %v1202 = vrot.slane %v1200, 1
        %v1203 = vor.u32 %v1198, %v1202
        %v1205 = vshll.u32 %v1158, 16
        %v1207 = vrot.slane %v1205, 1
        %v1208 = vsel %vm1172, %v1203, %v1207
        %v1210 = vshrl.u32 %v1111, 16
        %v1212 = vshll.u32 %v1111, 16
        %v1214 = vrot.slane %v1212, 1
        %v1215 = vor.u32 %v1210, %v1214
        %v1217 = vshll.u32 %v1159, 16
        %v1219 = vrot.slane %v1217, 1
        %v1220 = vsel %vm1172, %v1215, %v1219
        %v1222 = vshrl.u32 %v1112, 16
        %v1224 = vshll.u32 %v1112, 16
        %v1226 = vrot.slane %v1224, 1
        %v1227 = vor.u32 %v1222, %v1226
        %v1229 = vshll.u32 %v1160, 16
        %v1231 = vrot.slane %v1229, 1
        %v1232 = vsel %vm1172, %v1227, %v1231
        %v1234 = vshrl.u32 %v1113, 16
        %v1236 = vshll.u32 %v1113, 16
        %v1238 = vrot.slane %v1236, 1
        %v1239 = vor.u32 %v1234, %v1238
        %v1241 = vshll.u32 %v1161, 16
        %v1243 = vrot.slane %v1241, 1
        %v1244 = vsel %vm1172, %v1239, %v1243
        %v1246 = vshrl.u32 %v1114, 16
        %v1248 = vshll.u32 %v1114, 16
        %v1250 = vrot.slane %v1248, 1
        %v1251 = vor.u32 %v1246, %v1250
        %v1253 = vshll.u32 %v1162, 16
        %v1255 = vrot.slane %v1253, 1
        %v1256 = vsel %vm1172, %v1251, %v1255
        %v1258 = vshrl.u32 %v1115, 16
        %v1260 = vshll.u32 %v1115, 16
        %v1262 = vrot.slane %v1260, 1
        %v1263 = vor.u32 %v1258, %v1262
        %v1265 = vshll.u32 %v1163, 16
        %v1267 = vrot.slane %v1265, 1
        %v1268 = vsel %vm1172, %v1263, %v1267
        %v1270 = vshrl.u32 %v1116, 16
        %v1272 = vshll.u32 %v1116, 16
        %v1274 = vrot.slane %v1272, 1
        %v1275 = vor.u32 %v1270, %v1274
        %v1277 = vshll.u32 %v1164, 16
        %v1279 = vrot.slane %v1277, 1
        %v1280 = vsel %vm1172, %v1275, %v1279
        %v1282 = vshrl.u32 %v1117, 16
        %v1284 = vshll.u32 %v1117, 16
        %v1286 = vrot.slane %v1284, 1
        %v1287 = vor.u32 %v1282, %v1286
        %v1289 = vshll.u32 %v1165, 16
        %v1291 = vrot.slane %v1289, 1
        %v1292 = vsel %vm1172, %v1287, %v1291
        %v1294 = vshrl.u32 %v1118, 16
        %v1296 = vshll.u32 %v1118, 16
        %v1298 = vrot.slane %v1296, 1
        %v1299 = vor.u32 %v1294, %v1298
        %v1301 = vshll.u32 %v1166, 16
        %v1303 = vrot.slane %v1301, 1
        %v1304 = vsel %vm1172, %v1299, %v1303
        %v1306 = vshrl.u32 %v1119, 16
        %v1308 = vshll.u32 %v1119, 16
        %v1310 = vrot.slane %v1308, 1
        %v1311 = vor.u32 %v1306, %v1310
        %v1313 = vshll.u32 %v1167, 16
        %v1315 = vrot.slane %v1313, 1
        %v1316 = vsel %vm1172, %v1311, %v1315
        %v1318 = vshrl.u32 %v1120, 16
        %v1320 = vshll.u32 %v1120, 16
        %v1322 = vrot.slane %v1320, 1
        %v1323 = vor.u32 %v1318, %v1322
        %v1325 = vshll.u32 %v1168, 16
        %v1327 = vrot.slane %v1325, 1
        %v1328 = vsel %vm1172, %v1323, %v1327
        %v1330 = vshrl.u32 %v1121, 16
        %v1332 = vshll.u32 %v1121, 16
        %v1334 = vrot.slane %v1332, 1
        %v1335 = vor.u32 %v1330, %v1334
        %v1337 = vshll.u32 %v1169, 16
        %v1339 = vrot.slane %v1337, 1
        %v1340 = vsel %vm1172, %v1335, %v1339
        %v1342 = vshrl.u32 %v1122, 16
        %v1344 = vshll.u32 %v1122, 16
        %v1346 = vrot.slane %v1344, 1
        %v1347 = vor.u32 %v1342, %v1346
        %v1349 = vshll.u32 %v1170, 16
        %v1351 = vrot.slane %v1349, 1
        %v1352 = vsel %vm1172, %v1347, %v1351
        %v1354 = vshrl.u32 %v1123, 16
        %v1356 = vshll.u32 %v1123, 16
        %v1358 = vrot.slane %v1356, 1
        %v1359 = vor.u32 %v1354, %v1358
        %v1361 = vshll.u32 %v1171, 16
        %v1363 = vrot.slane %v1361, 1
        %v1364 = vsel %vm1172, %v1359, %v1363
        %1365 = vrot.lane.b32.xlu0 %v1184, 3
        %v1366 = vpop.permute.xlu0 %1365
        %1367 = vrot.lane.b32.xlu0 %v1196, 3
        %v1368 = vpop.permute.xlu0 %1367
        %1369 = vrot.lane.b32.xlu0 %v1208, 3
        %v1370 = vpop.permute.xlu0 %1369
        %1371 = vrot.lane.b32.xlu0 %v1220, 3
        %v1372 = vpop.permute.xlu0 %1371
        %1373 = vrot.lane.b32.xlu0 %v1232, 3
        %v1374 = vpop.permute.xlu0 %1373
        %1375 = vrot.lane.b32.xlu0 %v1244, 3
        %v1376 = vpop.permute.xlu0 %1375
        %1377 = vrot.lane.b32.xlu0 %v1256, 3
        %v1378 = vpop.permute.xlu0 %1377
        %1379 = vrot.lane.b32.xlu0 %v1268, 3
        %v1380 = vpop.permute.xlu0 %1379
        %1381 = vrot.lane.b32.xlu0 %v1280, 3
        %v1382 = vpop.permute.xlu0 %1381
        %1383 = vrot.lane.b32.xlu0 %v1292, 3
        %v1384 = vpop.permute.xlu0 %1383
        %1385 = vrot.lane.b32.xlu0 %v1304, 3
        %v1386 = vpop.permute.xlu0 %1385
        %1387 = vrot.lane.b32.xlu0 %v1316, 3
        %v1388 = vpop.permute.xlu0 %1387
        %1389 = vrot.lane.b32.xlu0 %v1328, 3
        %v1390 = vpop.permute.xlu0 %1389
        %1391 = vrot.lane.b32.xlu0 %v1340, 3
        %v1392 = vpop.permute.xlu0 %1391
        %1393 = vrot.lane.b32.xlu0 %v1352, 3
        %v1394 = vpop.permute.xlu0 %1393
        %1395 = vrot.lane.b32.xlu0 %v1364, 3
        %v1396 = vpop.permute.xlu0 %1395
        %v1413 = vunpack.c.l.b16 %v899
        %v1414 = vunpack.c.l.b16 %v900
        %v1415 = vunpack.c.l.b16 %v901
        %v1416 = vunpack.c.l.b16 %v902
        %v1417 = vunpack.c.l.b16 %v903
        %v1418 = vunpack.c.l.b16 %v904
        %v1419 = vunpack.c.l.b16 %v905
        %v1420 = vunpack.c.l.b16 %v906
        %v1421 = vunpack.c.l.b16 %v907
        %v1422 = vunpack.c.l.b16 %v908
        %v1423 = vunpack.c.l.b16 %v909
        %v1424 = vunpack.c.l.b16 %v910
        %v1425 = vunpack.c.l.b16 %v911
        %v1426 = vunpack.c.l.b16 %v912
        %v1427 = vunpack.c.l.b16 %v913
        %v1428 = vunpack.c.l.b16 %v914
        %v1429 = vpack.c.b16 %v1077, %v1413
        %v1430 = vpack.c.b16 %v1079, %v1414
        %v1431 = vpack.c.b16 %v1081, %v1415
        %v1432 = vpack.c.b16 %v1083, %v1416
        %v1433 = vpack.c.b16 %v1085, %v1417
        %v1434 = vpack.c.b16 %v1087, %v1418
        %v1435 = vpack.c.b16 %v1089, %v1419
        %v1436 = vpack.c.b16 %v1091, %v1420
        %v1437 = vpack.c.b16 %v1093, %v1421
        %v1438 = vpack.c.b16 %v1095, %v1422
        %v1439 = vpack.c.b16 %v1097, %v1423
        %v1440 = vpack.c.b16 %v1099, %v1424
        %v1441 = vpack.c.b16 %v1101, %v1425
        %v1442 = vpack.c.b16 %v1103, %v1426
        %v1443 = vpack.c.b16 %v1105, %v1427
        %v1444 = vpack.c.b16 %v1107, %v1428
        %vm1445 = vcmask 1046528
        %v1446 = vrot.slane %v1429, 1
        %v1447 = vrot.slane %v1156, 1
        %v1448 = vsel %vm1445, %v1446, %v1447
        %v1449 = vrot.slane %v1430, 1
        %v1450 = vrot.slane %v1157, 1
        %v1451 = vsel %vm1445, %v1449, %v1450
        %v1452 = vrot.slane %v1431, 1
        %v1453 = vrot.slane %v1158, 1
        %v1454 = vsel %vm1445, %v1452, %v1453
        %v1455 = vrot.slane %v1432, 1
        %v1456 = vrot.slane %v1159, 1
        %v1457 = vsel %vm1445, %v1455, %v1456
        %v1458 = vrot.slane %v1433, 1
        %v1459 = vrot.slane %v1160, 1
        %v1460 = vsel %vm1445, %v1458, %v1459
        %v1461 = vrot.slane %v1434, 1
        %v1462 = vrot.slane %v1161, 1
        %v1463 = vsel %vm1445, %v1461, %v1462
        %v1464 = vrot.slane %v1435, 1
        %v1465 = vrot.slane %v1162, 1
        %v1466 = vsel %vm1445, %v1464, %v1465
        %v1467 = vrot.slane %v1436, 1
        %v1468 = vrot.slane %v1163, 1
        %v1469 = vsel %vm1445, %v1467, %v1468
        %v1470 = vrot.slane %v1437, 1
        %v1471 = vrot.slane %v1164, 1
        %v1472 = vsel %vm1445, %v1470, %v1471
        %v1473 = vrot.slane %v1438, 1
        %v1474 = vrot.slane %v1165, 1
        %v1475 = vsel %vm1445, %v1473, %v1474
        %v1476 = vrot.slane %v1439, 1
        %v1477 = vrot.slane %v1166, 1
        %v1478 = vsel %vm1445, %v1476, %v1477
        %v1479 = vrot.slane %v1440, 1
        %v1480 = vrot.slane %v1167, 1
        %v1481 = vsel %vm1445, %v1479, %v1480
        %v1482 = vrot.slane %v1441, 1
        %v1483 = vrot.slane %v1168, 1
        %v1484 = vsel %vm1445, %v1482, %v1483
        %v1485 = vrot.slane %v1442, 1
        %v1486 = vrot.slane %v1169, 1
        %v1487 = vsel %vm1445, %v1485, %v1486
        %v1488 = vrot.slane %v1443, 1
        %v1489 = vrot.slane %v1170, 1
        %v1490 = vsel %vm1445, %v1488, %v1489
        %v1491 = vrot.slane %v1444, 1
        %v1492 = vrot.slane %v1171, 1
        %v1493 = vsel %vm1445, %v1491, %v1492
        %1494 = vrot.lane.b32.xlu0 %v1448, 6
        %v1495 = vpop.permute.xlu0 %1494
        %1496 = vrot.lane.b32.xlu0 %v1451, 6
        %v1497 = vpop.permute.xlu0 %1496
        %1498 = vrot.lane.b32.xlu0 %v1454, 6
        %v1499 = vpop.permute.xlu0 %1498
        %1500 = vrot.lane.b32.xlu0 %v1457, 6
        %v1501 = vpop.permute.xlu0 %1500
        %1502 = vrot.lane.b32.xlu0 %v1460, 6
        %v1503 = vpop.permute.xlu0 %1502
        %1504 = vrot.lane.b32.xlu0 %v1463, 6
        %v1505 = vpop.permute.xlu0 %1504
        %1506 = vrot.lane.b32.xlu0 %v1466, 6
        %v1507 = vpop.permute.xlu0 %1506
        %1508 = vrot.lane.b32.xlu0 %v1469, 6
        %v1509 = vpop.permute.xlu0 %1508
        %1510 = vrot.lane.b32.xlu0 %v1472, 6
        %v1511 = vpop.permute.xlu0 %1510
        %1512 = vrot.lane.b32.xlu0 %v1475, 6
        %v1513 = vpop.permute.xlu0 %1512
        %1514 = vrot.lane.b32.xlu0 %v1478, 6
        %v1515 = vpop.permute.xlu0 %1514
        %1516 = vrot.lane.b32.xlu0 %v1481, 6
        %v1517 = vpop.permute.xlu0 %1516
        %1518 = vrot.lane.b32.xlu0 %v1484, 6
        %v1519 = vpop.permute.xlu0 %1518
        %1520 = vrot.lane.b32.xlu0 %v1487, 6
        %v1521 = vpop.permute.xlu0 %1520
        %1522 = vrot.lane.b32.xlu0 %v1490, 6
        %v1523 = vpop.permute.xlu0 %1522
        %1524 = vrot.lane.b32.xlu0 %v1493, 6
        %v1525 = vpop.permute.xlu0 %1524
        %v1558 = vunpack.c.l.b16 %v915
        %v1559 = vunpack.c.l.b16 %v916
        %v1560 = vunpack.c.l.b16 %v917
        %v1561 = vunpack.c.l.b16 %v918
        %v1562 = vunpack.c.l.b16 %v919
        %v1563 = vunpack.c.l.b16 %v920
        %v1564 = vunpack.c.l.b16 %v921
        %v1565 = vunpack.c.l.b16 %v922
        %v1566 = vunpack.c.l.b16 %v923
        %v1567 = vunpack.c.l.b16 %v924
        %v1568 = vunpack.c.l.b16 %v925
        %v1569 = vunpack.c.l.b16 %v926
        %v1570 = vunpack.c.l.b16 %v927
        %v1571 = vunpack.c.l.b16 %v928
        %v1572 = vunpack.c.l.b16 %v929
        %v1573 = vunpack.c.l.b16 %v930
        %v1574 = vunpack.c.l.b16 %v931
        %v1575 = vunpack.c.l.b16 %v932
        %v1576 = vunpack.c.l.b16 %v933
        %v1577 = vunpack.c.l.b16 %v934
        %v1578 = vunpack.c.l.b16 %v935
        %v1579 = vunpack.c.l.b16 %v936
        %v1580 = vunpack.c.l.b16 %v937
        %v1581 = vunpack.c.l.b16 %v938
        %v1582 = vunpack.c.l.b16 %v939
        %v1583 = vunpack.c.l.b16 %v940
        %v1584 = vunpack.c.l.b16 %v941
        %v1585 = vunpack.c.l.b16 %v942
        %v1586 = vunpack.c.l.b16 %v943
        %v1587 = vunpack.c.l.b16 %v944
        %v1588 = vunpack.c.l.b16 %v945
        %v1589 = vunpack.c.l.b16 %v946
        %v1590 = vpack.c.b16 %v1559, %v1558
        %v1591 = vpack.c.b16 %v1561, %v1560
        %v1592 = vpack.c.b16 %v1563, %v1562
        %v1593 = vpack.c.b16 %v1565, %v1564
        %v1594 = vpack.c.b16 %v1567, %v1566
        %v1595 = vpack.c.b16 %v1569, %v1568
        %v1596 = vpack.c.b16 %v1571, %v1570
        %v1597 = vpack.c.b16 %v1573, %v1572
        %v1598 = vpack.c.b16 %v1575, %v1574
        %v1599 = vpack.c.b16 %v1577, %v1576
        %v1600 = vpack.c.b16 %v1579, %v1578
        %v1601 = vpack.c.b16 %v1581, %v1580
        %v1602 = vpack.c.b16 %v1583, %v1582
        %v1603 = vpack.c.b16 %v1585, %v1584
        %v1604 = vpack.c.b16 %v1587, %v1586
        %v1605 = vpack.c.b16 %v1589, %v1588
        %1606 = vrot.lane.b32.xlu0 %v1590, 9
        %v1607 = vpop.permute.xlu0 %1606
        %1608 = vrot.lane.b32.xlu0 %v1591, 9
        %v1609 = vpop.permute.xlu0 %1608
        %1610 = vrot.lane.b32.xlu0 %v1592, 9
        %v1611 = vpop.permute.xlu0 %1610
        %1612 = vrot.lane.b32.xlu0 %v1593, 9
        %v1613 = vpop.permute.xlu0 %1612
        %1614 = vrot.lane.b32.xlu0 %v1594, 9
        %v1615 = vpop.permute.xlu0 %1614
        %1616 = vrot.lane.b32.xlu0 %v1595, 9
        %v1617 = vpop.permute.xlu0 %1616
        %1618 = vrot.lane.b32.xlu0 %v1596, 9
        %v1619 = vpop.permute.xlu0 %1618
        %1620 = vrot.lane.b32.xlu0 %v1597, 9
        %v1621 = vpop.permute.xlu0 %1620
        %1622 = vrot.lane.b32.xlu0 %v1598, 9
        %v1623 = vpop.permute.xlu0 %1622
        %1624 = vrot.lane.b32.xlu0 %v1599, 9
        %v1625 = vpop.permute.xlu0 %1624
        %1626 = vrot.lane.b32.xlu0 %v1600, 9
        %v1627 = vpop.permute.xlu0 %1626
        %1628 = vrot.lane.b32.xlu0 %v1601, 9
        %v1629 = vpop.permute.xlu0 %1628
        %1630 = vrot.lane.b32.xlu0 %v1602, 9
        %v1631 = vpop.permute.xlu0 %1630
        %1632 = vrot.lane.b32.xlu0 %v1603, 9
        %v1633 = vpop.permute.xlu0 %1632
        %1634 = vrot.lane.b32.xlu0 %v1604, 9
        %v1635 = vpop.permute.xlu0 %1634
        %1636 = vrot.lane.b32.xlu0 %v1605, 9
        %v1637 = vpop.permute.xlu0 %1636
        %v1654 = vunpack.c.l.b16 %v947
        %v1655 = vunpack.c.l.b16 %v948
        %v1656 = vunpack.c.l.b16 %v949
        %v1657 = vunpack.c.l.b16 %v950
        %v1658 = vunpack.c.l.b16 %v951
        %v1659 = vunpack.c.l.b16 %v952
        %v1660 = vunpack.c.l.b16 %v953
        %v1661 = vunpack.c.l.b16 %v954
        %v1662 = vunpack.c.l.b16 %v955
        %v1663 = vunpack.c.l.b16 %v956
        %v1664 = vunpack.c.l.b16 %v957
        %v1665 = vunpack.c.l.b16 %v958
        %v1666 = vunpack.c.l.b16 %v959
        %v1667 = vunpack.c.l.b16 %v960
        %v1668 = vunpack.c.l.b16 %v961
        %v1669 = vunpack.c.l.b16 %v962
        %v1670 = vpack.c.b16 %v1654, %v1654
        %v1671 = vpack.c.b16 %v1655, %v1655
        %v1672 = vpack.c.b16 %v1656, %v1656
        %v1673 = vpack.c.b16 %v1657, %v1657
        %v1674 = vpack.c.b16 %v1658, %v1658
        %v1675 = vpack.c.b16 %v1659, %v1659
        %v1676 = vpack.c.b16 %v1660, %v1660
        %v1677 = vpack.c.b16 %v1661, %v1661
        %v1678 = vpack.c.b16 %v1662, %v1662
        %v1679 = vpack.c.b16 %v1663, %v1663
        %v1680 = vpack.c.b16 %v1664, %v1664
        %v1681 = vpack.c.b16 %v1665, %v1665
        %v1682 = vpack.c.b16 %v1666, %v1666
        %v1683 = vpack.c.b16 %v1667, %v1667
        %v1684 = vpack.c.b16 %v1668, %v1668
        %v1685 = vpack.c.b16 %v1669, %v1669
        %v1687 = vshrl.u32 %v1590, 16
        %v1689 = vshll.u32 %v1590, 16
        %v1691 = vrot.slane %v1689, 1
        %v1692 = vor.u32 %v1687, %v1691
        %v1694 = vshll.u32 %v1670, 16
        %v1696 = vrot.slane %v1694, 1
        %v1697 = vsel %vm1172, %v1692, %v1696
        %v1699 = vshrl.u32 %v1591, 16
        %v1701 = vshll.u32 %v1591, 16
        %v1703 = vrot.slane %v1701, 1
        %v1704 = vor.u32 %v1699, %v1703
        %v1706 = vshll.u32 %v1671, 16
        %v1708 = vrot.slane %v1706, 1
        %v1709 = vsel %vm1172, %v1704, %v1708
        %v1711 = vshrl.u32 %v1592, 16
        %v1713 = vshll.u32 %v1592, 16
        %v1715 = vrot.slane %v1713, 1
        %v1716 = vor.u32 %v1711, %v1715
        %v1718 = vshll.u32 %v1672, 16
        %v1720 = vrot.slane %v1718, 1
        %v1721 = vsel %vm1172, %v1716, %v1720
        %v1723 = vshrl.u32 %v1593, 16
        %v1725 = vshll.u32 %v1593, 16
        %v1727 = vrot.slane %v1725, 1
        %v1728 = vor.u32 %v1723, %v1727
        %v1730 = vshll.u32 %v1673, 16
        %v1732 = vrot.slane %v1730, 1
        %v1733 = vsel %vm1172, %v1728, %v1732
        %v1735 = vshrl.u32 %v1594, 16
        %v1737 = vshll.u32 %v1594, 16
        %v1739 = vrot.slane %v1737, 1
        %v1740 = vor.u32 %v1735, %v1739
        %v1742 = vshll.u32 %v1674, 16
        %v1744 = vrot.slane %v1742, 1
        %v1745 = vsel %vm1172, %v1740, %v1744
        %v1747 = vshrl.u32 %v1595, 16
        %v1749 = vshll.u32 %v1595, 16
        %v1751 = vrot.slane %v1749, 1
        %v1752 = vor.u32 %v1747, %v1751
        %v1754 = vshll.u32 %v1675, 16
        %v1756 = vrot.slane %v1754, 1
        %v1757 = vsel %vm1172, %v1752, %v1756
        %v1759 = vshrl.u32 %v1596, 16
        %v1761 = vshll.u32 %v1596, 16
        %v1763 = vrot.slane %v1761, 1
        %v1764 = vor.u32 %v1759, %v1763
        %v1766 = vshll.u32 %v1676, 16
        %v1768 = vrot.slane %v1766, 1
        %v1769 = vsel %vm1172, %v1764, %v1768
        %v1771 = vshrl.u32 %v1597, 16
        %v1773 = vshll.u32 %v1597, 16
        %v1775 = vrot.slane %v1773, 1
        %v1776 = vor.u32 %v1771, %v1775
        %v1778 = vshll.u32 %v1677, 16
        %v1780 = vrot.slane %v1778, 1
        %v1781 = vsel %vm1172, %v1776, %v1780
        %v1783 = vshrl.u32 %v1598, 16
        %v1785 = vshll.u32 %v1598, 16
        %v1787 = vrot.slane %v1785, 1
        %v1788 = vor.u32 %v1783, %v1787
        %v1790 = vshll.u32 %v1678, 16
        %v1792 = vrot.slane %v1790, 1
        %v1793 = vsel %vm1172, %v1788, %v1792
        %v1795 = vshrl.u32 %v1599, 16
        %v1797 = vshll.u32 %v1599, 16
        %v1799 = vrot.slane %v1797, 1
        %v1800 = vor.u32 %v1795, %v1799
        %v1802 = vshll.u32 %v1679, 16
        %v1804 = vrot.slane %v1802, 1
        %v1805 = vsel %vm1172, %v1800, %v1804
        %v1807 = vshrl.u32 %v1600, 16
        %v1809 = vshll.u32 %v1600, 16
        %v1811 = vrot.slane %v1809, 1
        %v1812 = vor.u32 %v1807, %v1811
        %v1814 = vshll.u32 %v1680, 16
        %v1816 = vrot.slane %v1814, 1
        %v1817 = vsel %vm1172, %v1812, %v1816
        %v1819 = vshrl.u32 %v1601, 16
        %v1821 = vshll.u32 %v1601, 16
        %v1823 = vrot.slane %v1821, 1
        %v1824 = vor.u32 %v1819, %v1823
        %v1826 = vshll.u32 %v1681, 16
        %v1828 = vrot.slane %v1826, 1
        %v1829 = vsel %vm1172, %v1824, %v1828
        %v1831 = vshrl.u32 %v1602, 16
        %v1833 = vshll.u32 %v1602, 16
        %v1835 = vrot.slane %v1833, 1
        %v1836 = vor.u32 %v1831, %v1835
        %v1838 = vshll.u32 %v1682, 16
        %v1840 = vrot.slane %v1838, 1
        %v1841 = vsel %vm1172, %v1836, %v1840
        %v1843 = vshrl.u32 %v1603, 16
        %v1845 = vshll.u32 %v1603, 16
        %v1847 = vrot.slane %v1845, 1
        %v1848 = vor.u32 %v1843, %v1847
        %v1850 = vshll.u32 %v1683, 16
        %v1852 = vrot.slane %v1850, 1
        %v1853 = vsel %vm1172, %v1848, %v1852
        %v1855 = vshrl.u32 %v1604, 16
        %v1857 = vshll.u32 %v1604, 16
        %v1859 = vrot.slane %v1857, 1
        %v1860 = vor.u32 %v1855, %v1859
        %v1862 = vshll.u32 %v1684, 16
        %v1864 = vrot.slane %v1862, 1
        %v1865 = vsel %vm1172, %v1860, %v1864
        %v1867 = vshrl.u32 %v1605, 16
        %v1869 = vshll.u32 %v1605, 16
        %v1871 = vrot.slane %v1869, 1
        %v1872 = vor.u32 %v1867, %v1871
        %v1874 = vshll.u32 %v1685, 16
        %v1876 = vrot.slane %v1874, 1
        %v1877 = vsel %vm1172, %v1872, %v1876
        %1878 = vrot.lane.b32.xlu0 %v1697, 12
        %v1879 = vpop.permute.xlu0 %1878
        %1880 = vrot.lane.b32.xlu0 %v1709, 12
        %v1881 = vpop.permute.xlu0 %1880
        %1882 = vrot.lane.b32.xlu0 %v1721, 12
        %v1883 = vpop.permute.xlu0 %1882
        %1884 = vrot.lane.b32.xlu0 %v1733, 12
        %v1885 = vpop.permute.xlu0 %1884
        %1886 = vrot.lane.b32.xlu0 %v1745, 12
        %v1887 = vpop.permute.xlu0 %1886
        %1888 = vrot.lane.b32.xlu0 %v1757, 12
        %v1889 = vpop.permute.xlu0 %1888
        %1890 = vrot.lane.b32.xlu0 %v1769, 12
        %v1891 = vpop.permute.xlu0 %1890
        %1892 = vrot.lane.b32.xlu0 %v1781, 12
        %v1893 = vpop.permute.xlu0 %1892
        %1894 = vrot.lane.b32.xlu0 %v1793, 12
        %v1895 = vpop.permute.xlu0 %1894
        %1896 = vrot.lane.b32.xlu0 %v1805, 12
        %v1897 = vpop.permute.xlu0 %1896
        %1898 = vrot.lane.b32.xlu0 %v1817, 12
        %v1899 = vpop.permute.xlu0 %1898
        %1900 = vrot.lane.b32.xlu0 %v1829, 12
        %v1901 = vpop.permute.xlu0 %1900
        %1902 = vrot.lane.b32.xlu0 %v1841, 12
        %v1903 = vpop.permute.xlu0 %1902
        %1904 = vrot.lane.b32.xlu0 %v1853, 12
        %v1905 = vpop.permute.xlu0 %1904
        %1906 = vrot.lane.b32.xlu0 %v1865, 12
        %v1907 = vpop.permute.xlu0 %1906
        %1908 = vrot.lane.b32.xlu0 %v1877, 12
        %v1909 = vpop.permute.xlu0 %1908
        %v1926 = vunpack.c.l.b16 %v963
        %v1927 = vunpack.c.l.b16 %v964
        %v1928 = vunpack.c.l.b16 %v965
        %v1929 = vunpack.c.l.b16 %v966
        %v1930 = vunpack.c.l.b16 %v967
        %v1931 = vunpack.c.l.b16 %v968
        %v1932 = vunpack.c.l.b16 %v969
        %v1933 = vunpack.c.l.b16 %v970
        %v1934 = vunpack.c.l.b16 %v971
        %v1935 = vunpack.c.l.b16 %v972
        %v1936 = vunpack.c.l.b16 %v973
        %v1937 = vunpack.c.l.b16 %v974
        %v1938 = vunpack.c.l.b16 %v975
        %v1939 = vunpack.c.l.b16 %v976
        %v1940 = vunpack.c.l.b16 %v977
        %v1941 = vunpack.c.l.b16 %v978
        %v1942 = vpack.c.b16 %v1559, %v1926
        %v1943 = vpack.c.b16 %v1561, %v1927
        %v1944 = vpack.c.b16 %v1563, %v1928
        %v1945 = vpack.c.b16 %v1565, %v1929
        %v1946 = vpack.c.b16 %v1567, %v1930
        %v1947 = vpack.c.b16 %v1569, %v1931
        %v1948 = vpack.c.b16 %v1571, %v1932
        %v1949 = vpack.c.b16 %v1573, %v1933
        %v1950 = vpack.c.b16 %v1575, %v1934
        %v1951 = vpack.c.b16 %v1577, %v1935
        %v1952 = vpack.c.b16 %v1579, %v1936
        %v1953 = vpack.c.b16 %v1581, %v1937
        %v1954 = vpack.c.b16 %v1583, %v1938
        %v1955 = vpack.c.b16 %v1585, %v1939
        %v1956 = vpack.c.b16 %v1587, %v1940
        %v1957 = vpack.c.b16 %v1589, %v1941
        %v1958 = vrot.slane %v1942, 1
        %v1959 = vrot.slane %v1670, 1
        %v1960 = vsel %vm1445, %v1958, %v1959
        %v1961 = vrot.slane %v1943, 1
        %v1962 = vrot.slane %v1671, 1
        %v1963 = vsel %vm1445, %v1961, %v1962
        %v1964 = vrot.slane %v1944, 1
        %v1965 = vrot.slane %v1672, 1
        %v1966 = vsel %vm1445, %v1964, %v1965
        %v1967 = vrot.slane %v1945, 1
        %v1968 = vrot.slane %v1673, 1
        %v1969 = vsel %vm1445, %v1967, %v1968
        %v1970 = vrot.slane %v1946, 1
        %v1971 = vrot.slane %v1674, 1
        %v1972 = vsel %vm1445, %v1970, %v1971
        %v1973 = vrot.slane %v1947, 1
        %v1974 = vrot.slane %v1675, 1
        %v1975 = vsel %vm1445, %v1973, %v1974
        %v1976 = vrot.slane %v1948, 1
        %v1977 = vrot.slane %v1676, 1
        %v1978 = vsel %vm1445, %v1976, %v1977
        %v1979 = vrot.slane %v1949, 1
        %v1980 = vrot.slane %v1677, 1
        %v1981 = vsel %vm1445, %v1979, %v1980
        %v1982 = vrot.slane %v1950, 1
        %v1983 = vrot.slane %v1678, 1
        %v1984 = vsel %vm1445, %v1982, %v1983
        %v1985 = vrot.slane %v1951, 1
        %v1986 = vrot.slane %v1679, 1
        %v1987 = vsel %vm1445, %v1985, %v1986
        %v1988 = vrot.slane %v1952, 1
        %v1989 = vrot.slane %v1680, 1
        %v1990 = vsel %vm1445, %v1988, %v1989
        %v1991 = vrot.slane %v1953, 1
        %v1992 = vrot.slane %v1681, 1
        %v1993 = vsel %vm1445, %v1991, %v1992
        %v1994 = vrot.slane %v1954, 1
        %v1995 = vrot.slane %v1682, 1
        %v1996 = vsel %vm1445, %v1994, %v1995
        %v1997 = vrot.slane %v1955, 1
        %v1998 = vrot.slane %v1683, 1
        %v1999 = vsel %vm1445, %v1997, %v1998
        %v2000 = vrot.slane %v1956, 1
        %v2001 = vrot.slane %v1684, 1
        %v2002 = vsel %vm1445, %v2000, %v2001
        %v2003 = vrot.slane %v1957, 1
        %v2004 = vrot.slane %v1685, 1
        %v2005 = vsel %vm1445, %v2003, %v2004
        %2006 = vrot.lane.b32.xlu0 %v1960, 15
        %v2007 = vpop.permute.xlu0 %2006
        %2008 = vrot.lane.b32.xlu0 %v1963, 15
        %v2009 = vpop.permute.xlu0 %2008
        %2010 = vrot.lane.b32.xlu0 %v1966, 15
        %v2011 = vpop.permute.xlu0 %2010
        %2012 = vrot.lane.b32.xlu0 %v1969, 15
        %v2013 = vpop.permute.xlu0 %2012
        %2014 = vrot.lane.b32.xlu0 %v1972, 15
        %v2015 = vpop.permute.xlu0 %2014
        %2016 = vrot.lane.b32.xlu0 %v1975, 15
        %v2017 = vpop.permute.xlu0 %2016
        %2018 = vrot.lane.b32.xlu0 %v1978, 15
        %v2019 = vpop.permute.xlu0 %2018
        %2020 = vrot.lane.b32.xlu0 %v1981, 15
        %v2021 = vpop.permute.xlu0 %2020
        %2022 = vrot.lane.b32.xlu0 %v1984, 15
        %v2023 = vpop.permute.xlu0 %2022
        %2024 = vrot.lane.b32.xlu0 %v1987, 15
        %v2025 = vpop.permute.xlu0 %2024
        %2026 = vrot.lane.b32.xlu0 %v1990, 15
        %v2027 = vpop.permute.xlu0 %2026
        %2028 = vrot.lane.b32.xlu0 %v1993, 15
        %v2029 = vpop.permute.xlu0 %2028
        %2030 = vrot.lane.b32.xlu0 %v1996, 15
        %v2031 = vpop.permute.xlu0 %2030
        %2032 = vrot.lane.b32.xlu0 %v1999, 15
        %v2033 = vpop.permute.xlu0 %2032
        %2034 = vrot.lane.b32.xlu0 %v2002, 15
        %v2035 = vpop.permute.xlu0 %2034
        %2036 = vrot.lane.b32.xlu0 %v2005, 15
        %v2037 = vpop.permute.xlu0 %2036
        %v2070 = vunpack.c.l.b16 %v980
        %v2071 = vunpack.c.l.b16 %v981
        %v2072 = vunpack.c.l.b16 %v982
        %v2073 = vunpack.c.l.b16 %v983
        %v2074 = vunpack.c.l.b16 %v984
        %v2075 = vunpack.c.l.b16 %v985
        %v2076 = vunpack.c.l.b16 %v986
        %v2077 = vunpack.c.l.b16 %v987
        %v2078 = vunpack.c.l.b16 %v988
        %v2079 = vunpack.c.l.b16 %v989
        %v2080 = vunpack.c.l.b16 %v990
        %v2081 = vunpack.c.l.b16 %v991
        %v2082 = vunpack.c.l.b16 %v992
        %v2083 = vunpack.c.l.b16 %v993
        %v2084 = vunpack.c.l.b16 %v994
        %v2085 = vunpack.c.l.b16 %v995
        %v2086 = vunpack.c.l.b16 %v996
        %v2087 = vunpack.c.l.b16 %v997
        %v2088 = vunpack.c.l.b16 %v998
        %v2089 = vunpack.c.l.b16 %v999
        %v2090 = vunpack.c.l.b16 %v1000
        %v2091 = vunpack.c.l.b16 %v1001
        %v2092 = vunpack.c.l.b16 %v1002
        %v2093 = vunpack.c.l.b16 %v1003
        %v2094 = vunpack.c.l.b16 %v1004
        %v2095 = vunpack.c.l.b16 %v1005
        %v2096 = vunpack.c.l.b16 %v1006
        %v2097 = vunpack.c.l.b16 %v1007
        %v2098 = vunpack.c.l.b16 %v1008
        %v2099 = vunpack.c.l.b16 %v1009
        %v2100 = vunpack.c.l.b16 %v1010
        %v2101 = vunpack.c.l.b16 %v1011
        %v2102 = vpack.c.b16 %v2071, %v2070
        %v2103 = vpack.c.b16 %v2073, %v2072
        %v2104 = vpack.c.b16 %v2075, %v2074
        %v2105 = vpack.c.b16 %v2077, %v2076
        %v2106 = vpack.c.b16 %v2079, %v2078
        %v2107 = vpack.c.b16 %v2081, %v2080
        %v2108 = vpack.c.b16 %v2083, %v2082
        %v2109 = vpack.c.b16 %v2085, %v2084
        %v2110 = vpack.c.b16 %v2087, %v2086
        %v2111 = vpack.c.b16 %v2089, %v2088
        %v2112 = vpack.c.b16 %v2091, %v2090
        %v2113 = vpack.c.b16 %v2093, %v2092
        %v2114 = vpack.c.b16 %v2095, %v2094
        %v2115 = vpack.c.b16 %v2097, %v2096
        %v2116 = vpack.c.b16 %v2099, %v2098
        %v2117 = vpack.c.b16 %v2101, %v2100
        %2118 = vrot.lane.b32.xlu0 %v2102, 18
        %v2119 = vpop.permute.xlu0 %2118
        %2120 = vrot.lane.b32.xlu0 %v2103, 18
        %v2121 = vpop.permute.xlu0 %2120
        %2122 = vrot.lane.b32.xlu0 %v2104, 18
        %v2123 = vpop.permute.xlu0 %2122
        %2124 = vrot.lane.b32.xlu0 %v2105, 18
        %v2125 = vpop.permute.xlu0 %2124
        %2126 = vrot.lane.b32.xlu0 %v2106, 18
        %v2127 = vpop.permute.xlu0 %2126
        %2128 = vrot.lane.b32.xlu0 %v2107, 18
        %v2129 = vpop.permute.xlu0 %2128
        %2130 = vrot.lane.b32.xlu0 %v2108, 18
        %v2131 = vpop.permute.xlu0 %2130
        %2132 = vrot.lane.b32.xlu0 %v2109, 18
        %v2133 = vpop.permute.xlu0 %2132
        %2134 = vrot.lane.b32.xlu0 %v2110, 18
        %v2135 = vpop.permute.xlu0 %2134
        %2136 = vrot.lane.b32.xlu0 %v2111, 18
        %v2137 = vpop.permute.xlu0 %2136
        %2138 = vrot.lane.b32.xlu0 %v2112, 18
        %v2139 = vpop.permute.xlu0 %2138
        %2140 = vrot.lane.b32.xlu0 %v2113, 18
        %v2141 = vpop.permute.xlu0 %2140
        %2142 = vrot.lane.b32.xlu0 %v2114, 18
        %v2143 = vpop.permute.xlu0 %2142
        %2144 = vrot.lane.b32.xlu0 %v2115, 18
        %v2145 = vpop.permute.xlu0 %2144
        %2146 = vrot.lane.b32.xlu0 %v2116, 18
        %v2147 = vpop.permute.xlu0 %2146
        %2148 = vrot.lane.b32.xlu0 %v2117, 18
        %v2149 = vpop.permute.xlu0 %2148
        %v2166 = vunpack.c.l.b16 %v1012
        %v2167 = vunpack.c.l.b16 %v1013
        %v2168 = vunpack.c.l.b16 %v1014
        %v2169 = vunpack.c.l.b16 %v1015
        %v2170 = vunpack.c.l.b16 %v1016
        %v2171 = vunpack.c.l.b16 %v1017
        %v2172 = vunpack.c.l.b16 %v1018
        %v2173 = vunpack.c.l.b16 %v1019
        %v2174 = vunpack.c.l.b16 %v1020
        %v2175 = vunpack.c.l.b16 %v1021
        %v2176 = vunpack.c.l.b16 %v1022
        %v2177 = vunpack.c.l.b16 %v1023
        %v2178 = vunpack.c.l.b16 %v1024
        %v2179 = vunpack.c.l.b16 %v1025
        %v2180 = vunpack.c.l.b16 %v1026
        %v2181 = vunpack.c.l.b16 %v1027
        %v2182 = vpack.c.b16 %v2166, %v2166
        %v2183 = vpack.c.b16 %v2167, %v2167
        %v2184 = vpack.c.b16 %v2168, %v2168
        %v2185 = vpack.c.b16 %v2169, %v2169
        %v2186 = vpack.c.b16 %v2170, %v2170
        %v2187 = vpack.c.b16 %v2171, %v2171
        %v2188 = vpack.c.b16 %v2172, %v2172
        %v2189 = vpack.c.b16 %v2173, %v2173
        %v2190 = vpack.c.b16 %v2174, %v2174
        %v2191 = vpack.c.b16 %v2175, %v2175
        %v2192 = vpack.c.b16 %v2176, %v2176
        %v2193 = vpack.c.b16 %v2177, %v2177
        %v2194 = vpack.c.b16 %v2178, %v2178
        %v2195 = vpack.c.b16 %v2179, %v2179
        %v2196 = vpack.c.b16 %v2180, %v2180
        %v2197 = vpack.c.b16 %v2181, %v2181
        %v2199 = vshrl.u32 %v2102, 16
        %v2201 = vshll.u32 %v2102, 16
        %v2203 = vrot.slane %v2201, 1
        %v2204 = vor.u32 %v2199, %v2203
        %v2206 = vshll.u32 %v2182, 16
        %v2208 = vrot.slane %v2206, 1
        %v2209 = vsel %vm1172, %v2204, %v2208
        %v2211 = vshrl.u32 %v2103, 16
        %v2213 = vshll.u32 %v2103, 16
        %v2215 = vrot.slane %v2213, 1
        %v2216 = vor.u32 %v2211, %v2215
        %v2218 = vshll.u32 %v2183, 16
        %v2220 = vrot.slane %v2218, 1
        %v2221 = vsel %vm1172, %v2216, %v2220
        %v2223 = vshrl.u32 %v2104, 16
        %v2225 = vshll.u32 %v2104, 16
        %v2227 = vrot.slane %v2225, 1
        %v2228 = vor.u32 %v2223, %v2227
        %v2230 = vshll.u32 %v2184, 16
        %v2232 = vrot.slane %v2230, 1
        %v2233 = vsel %vm1172, %v2228, %v2232
        %v2235 = vshrl.u32 %v2105, 16
        %v2237 = vshll.u32 %v2105, 16
        %v2239 = vrot.slane %v2237, 1
        %v2240 = vor.u32 %v2235, %v2239
        %v2242 = vshll.u32 %v2185, 16
        %v2244 = vrot.slane %v2242, 1
        %v2245 = vsel %vm1172, %v2240, %v2244
        %v2247 = vshrl.u32 %v2106, 16
        %v2249 = vshll.u32 %v2106, 16
        %v2251 = vrot.slane %v2249, 1
        %v2252 = vor.u32 %v2247, %v2251
        %v2254 = vshll.u32 %v2186, 16
        %v2256 = vrot.slane %v2254, 1
        %v2257 = vsel %vm1172, %v2252, %v2256
        %v2259 = vshrl.u32 %v2107, 16
        %v2261 = vshll.u32 %v2107, 16
        %v2263 = vrot.slane %v2261, 1
        %v2264 = vor.u32 %v2259, %v2263
        %v2266 = vshll.u32 %v2187, 16
        %v2268 = vrot.slane %v2266, 1
        %v2269 = vsel %vm1172, %v2264, %v2268
        %v2271 = vshrl.u32 %v2108, 16
        %v2273 = vshll.u32 %v2108, 16
        %v2275 = vrot.slane %v2273, 1
        %v2276 = vor.u32 %v2271, %v2275
        %v2278 = vshll.u32 %v2188, 16
        %v2280 = vrot.slane %v2278, 1
        %v2281 = vsel %vm1172, %v2276, %v2280
        %v2283 = vshrl.u32 %v2109, 16
        %v2285 = vshll.u32 %v2109, 16
        %v2287 = vrot.slane %v2285, 1
        %v2288 = vor.u32 %v2283, %v2287
        %v2290 = vshll.u32 %v2189, 16
        %v2292 = vrot.slane %v2290, 1
        %v2293 = vsel %vm1172, %v2288, %v2292
        %v2295 = vshrl.u32 %v2110, 16
        %v2297 = vshll.u32 %v2110, 16
        %v2299 = vrot.slane %v2297, 1
        %v2300 = vor.u32 %v2295, %v2299
        %v2302 = vshll.u32 %v2190, 16
        %v2304 = vrot.slane %v2302, 1
        %v2305 = vsel %vm1172, %v2300, %v2304
        %v2307 = vshrl.u32 %v2111, 16
        %v2309 = vshll.u32 %v2111, 16
        %v2311 = vrot.slane %v2309, 1
        %v2312 = vor.u32 %v2307, %v2311
        %v2314 = vshll.u32 %v2191, 16
        %v2316 = vrot.slane %v2314, 1
        %v2317 = vsel %vm1172, %v2312, %v2316
        %v2319 = vshrl.u32 %v2112, 16
        %v2321 = vshll.u32 %v2112, 16
        %v2323 = vrot.slane %v2321, 1
        %v2324 = vor.u32 %v2319, %v2323
        %v2326 = vshll.u32 %v2192, 16
        %v2328 = vrot.slane %v2326, 1
        %v2329 = vsel %vm1172, %v2324, %v2328
        %v2331 = vshrl.u32 %v2113, 16
        %v2333 = vshll.u32 %v2113, 16
        %v2335 = vrot.slane %v2333, 1
        %v2336 = vor.u32 %v2331, %v2335
        %v2338 = vshll.u32 %v2193, 16
        %v2340 = vrot.slane %v2338, 1
        %v2341 = vsel %vm1172, %v2336, %v2340
        %v2343 = vshrl.u32 %v2114, 16
        %v2345 = vshll.u32 %v2114, 16
        %v2347 = vrot.slane %v2345, 1
        %v2348 = vor.u32 %v2343, %v2347
        %v2350 = vshll.u32 %v2194, 16
        %v2352 = vrot.slane %v2350, 1
        %v2353 = vsel %vm1172, %v2348, %v2352
        %v2355 = vshrl.u32 %v2115, 16
        %v2357 = vshll.u32 %v2115, 16
        %v2359 = vrot.slane %v2357, 1
        %v2360 = vor.u32 %v2355, %v2359
        %v2362 = vshll.u32 %v2195, 16
        %v2364 = vrot.slane %v2362, 1
        %v2365 = vsel %vm1172, %v2360, %v2364
        %v2367 = vshrl.u32 %v2116, 16
        %v2369 = vshll.u32 %v2116, 16
        %v2371 = vrot.slane %v2369, 1
        %v2372 = vor.u32 %v2367, %v2371
        %v2374 = vshll.u32 %v2196, 16
        %v2376 = vrot.slane %v2374, 1
        %v2377 = vsel %vm1172, %v2372, %v2376
        %v2379 = vshrl.u32 %v2117, 16
        %v2381 = vshll.u32 %v2117, 16
        %v2383 = vrot.slane %v2381, 1
        %v2384 = vor.u32 %v2379, %v2383
        %v2386 = vshll.u32 %v2197, 16
        %v2388 = vrot.slane %v2386, 1
        %v2389 = vsel %vm1172, %v2384, %v2388
        %2390 = vrot.lane.b32.xlu0 %v2209, 21
        %v2391 = vpop.permute.xlu0 %2390
        %2392 = vrot.lane.b32.xlu0 %v2221, 21
        %v2393 = vpop.permute.xlu0 %2392
        %2394 = vrot.lane.b32.xlu0 %v2233, 21
        %v2395 = vpop.permute.xlu0 %2394
        %2396 = vrot.lane.b32.xlu0 %v2245, 21
        %v2397 = vpop.permute.xlu0 %2396
        %2398 = vrot.lane.b32.xlu0 %v2257, 21
        %v2399 = vpop.permute.xlu0 %2398
        %2400 = vrot.lane.b32.xlu0 %v2269, 21
        %v2401 = vpop.permute.xlu0 %2400
        %2402 = vrot.lane.b32.xlu0 %v2281, 21
        %v2403 = vpop.permute.xlu0 %2402
        %2404 = vrot.lane.b32.xlu0 %v2293, 21
        %v2405 = vpop.permute.xlu0 %2404
        %2406 = vrot.lane.b32.xlu0 %v2305, 21
        %v2407 = vpop.permute.xlu0 %2406
        %2408 = vrot.lane.b32.xlu0 %v2317, 21
        %v2409 = vpop.permute.xlu0 %2408
        %2410 = vrot.lane.b32.xlu0 %v2329, 21
        %v2411 = vpop.permute.xlu0 %2410
        %2412 = vrot.lane.b32.xlu0 %v2341, 21
        %v2413 = vpop.permute.xlu0 %2412
        %2414 = vrot.lane.b32.xlu0 %v2353, 21
        %v2415 = vpop.permute.xlu0 %2414
        %2416 = vrot.lane.b32.xlu0 %v2365, 21
        %v2417 = vpop.permute.xlu0 %2416
        %2418 = vrot.lane.b32.xlu0 %v2377, 21
        %v2419 = vpop.permute.xlu0 %2418
        %2420 = vrot.lane.b32.xlu0 %v2389, 21
        %v2421 = vpop.permute.xlu0 %2420
        %v2438 = vunpack.c.l.b16 %v1028
        %v2439 = vunpack.c.l.b16 %v1029
        %v2440 = vunpack.c.l.b16 %v1030
        %v2441 = vunpack.c.l.b16 %v1031
        %v2442 = vunpack.c.l.b16 %v1032
        %v2443 = vunpack.c.l.b16 %v1033
        %v2444 = vunpack.c.l.b16 %v1034
        %v2445 = vunpack.c.l.b16 %v1035
        %v2446 = vunpack.c.l.b16 %v1036
        %v2447 = vunpack.c.l.b16 %v1037
        %v2448 = vunpack.c.l.b16 %v1038
        %v2449 = vunpack.c.l.b16 %v1039
        %v2450 = vunpack.c.l.b16 %v1040
        %v2451 = vunpack.c.l.b16 %v1041
        %v2452 = vunpack.c.l.b16 %v1042
        %v2453 = vunpack.c.l.b16 %v1043
        %v2454 = vpack.c.b16 %v2071, %v2438
        %v2455 = vpack.c.b16 %v2073, %v2439
        %v2456 = vpack.c.b16 %v2075, %v2440
        %v2457 = vpack.c.b16 %v2077, %v2441
        %v2458 = vpack.c.b16 %v2079, %v2442
        %v2459 = vpack.c.b16 %v2081, %v2443
        %v2460 = vpack.c.b16 %v2083, %v2444
        %v2461 = vpack.c.b16 %v2085, %v2445
        %v2462 = vpack.c.b16 %v2087, %v2446
        %v2463 = vpack.c.b16 %v2089, %v2447
        %v2464 = vpack.c.b16 %v2091, %v2448
        %v2465 = vpack.c.b16 %v2093, %v2449
        %v2466 = vpack.c.b16 %v2095, %v2450
        %v2467 = vpack.c.b16 %v2097, %v2451
        %v2468 = vpack.c.b16 %v2099, %v2452
        %v2469 = vpack.c.b16 %v2101, %v2453
        %v2470 = vrot.slane %v2454, 1
        %v2471 = vrot.slane %v2182, 1
        %v2472 = vsel %vm1445, %v2470, %v2471
        %v2473 = vrot.slane %v2455, 1
        %v2474 = vrot.slane %v2183, 1
        %v2475 = vsel %vm1445, %v2473, %v2474
        %v2476 = vrot.slane %v2456, 1
        %v2477 = vrot.slane %v2184, 1
        %v2478 = vsel %vm1445, %v2476, %v2477
        %v2479 = vrot.slane %v2457, 1
        %v2480 = vrot.slane %v2185, 1
        %v2481 = vsel %vm1445, %v2479, %v2480
        %v2482 = vrot.slane %v2458, 1
        %v2483 = vrot.slane %v2186, 1
        %v2484 = vsel %vm1445, %v2482, %v2483
        %v2485 = vrot.slane %v2459, 1
        %v2486 = vrot.slane %v2187, 1
        %v2487 = vsel %vm1445, %v2485, %v2486
        %v2488 = vrot.slane %v2460, 1
        %v2489 = vrot.slane %v2188, 1
        %v2490 = vsel %vm1445, %v2488, %v2489
        %v2491 = vrot.slane %v2461, 1
        %v2492 = vrot.slane %v2189, 1
        %v2493 = vsel %vm1445, %v2491, %v2492
        %v2494 = vrot.slane %v2462, 1
        %v2495 = vrot.slane %v2190, 1
        %v2496 = vsel %vm1445, %v2494, %v2495
        %v2497 = vrot.slane %v2463, 1
        %v2498 = vrot.slane %v2191, 1
        %v2499 = vsel %vm1445, %v2497, %v2498
        %v2500 = vrot.slane %v2464, 1
        %v2501 = vrot.slane %v2192, 1
        %v2502 = vsel %vm1445, %v2500, %v2501
        %v2503 = vrot.slane %v2465, 1
        %v2504 = vrot.slane %v2193, 1
        %v2505 = vsel %vm1445, %v2503, %v2504
        %v2506 = vrot.slane %v2466, 1
        %v2507 = vrot.slane %v2194, 1
        %v2508 = vsel %vm1445, %v2506, %v2507
        %v2509 = vrot.slane %v2467, 1
        %v2510 = vrot.slane %v2195, 1
        %v2511 = vsel %vm1445, %v2509, %v2510
        %v2512 = vrot.slane %v2468, 1
        %v2513 = vrot.slane %v2196, 1
        %v2514 = vsel %vm1445, %v2512, %v2513
        %v2515 = vrot.slane %v2469, 1
        %v2516 = vrot.slane %v2197, 1
        %v2517 = vsel %vm1445, %v2515, %v2516
        %2518 = vrot.lane.b32.xlu0 %v2472, 24
        %v2519 = vpop.permute.xlu0 %2518
        %2520 = vrot.lane.b32.xlu0 %v2475, 24
        %v2521 = vpop.permute.xlu0 %2520
        %2522 = vrot.lane.b32.xlu0 %v2478, 24
        %v2523 = vpop.permute.xlu0 %2522
        %2524 = vrot.lane.b32.xlu0 %v2481, 24
        %v2525 = vpop.permute.xlu0 %2524
        %2526 = vrot.lane.b32.xlu0 %v2484, 24
        %v2527 = vpop.permute.xlu0 %2526
        %2528 = vrot.lane.b32.xlu0 %v2487, 24
        %v2529 = vpop.permute.xlu0 %2528
        %2530 = vrot.lane.b32.xlu0 %v2490, 24
        %v2531 = vpop.permute.xlu0 %2530
        %2532 = vrot.lane.b32.xlu0 %v2493, 24
        %v2533 = vpop.permute.xlu0 %2532
        %2534 = vrot.lane.b32.xlu0 %v2496, 24
        %v2535 = vpop.permute.xlu0 %2534
        %2536 = vrot.lane.b32.xlu0 %v2499, 24
        %v2537 = vpop.permute.xlu0 %2536
        %2538 = vrot.lane.b32.xlu0 %v2502, 24
        %v2539 = vpop.permute.xlu0 %2538
        %2540 = vrot.lane.b32.xlu0 %v2505, 24
        %v2541 = vpop.permute.xlu0 %2540
        %2542 = vrot.lane.b32.xlu0 %v2508, 24
        %v2543 = vpop.permute.xlu0 %2542
        %2544 = vrot.lane.b32.xlu0 %v2511, 24
        %v2545 = vpop.permute.xlu0 %2544
        %2546 = vrot.lane.b32.xlu0 %v2514, 24
        %v2547 = vpop.permute.xlu0 %2546
        %2548 = vrot.lane.b32.xlu0 %v2517, 24
        %v2549 = vpop.permute.xlu0 %2548
        %vm2550 = vcmask 23552
        %v2552 = vsel %vm2550, %v1108, %v1366
        %v2554 = vsel %vm2550, %v1109, %v1368
        %v2556 = vsel %vm2550, %v1110, %v1370
        %v2558 = vsel %vm2550, %v1111, %v1372
        %v2560 = vsel %vm2550, %v1112, %v1374
        %v2562 = vsel %vm2550, %v1113, %v1376
        %v2564 = vsel %vm2550, %v1114, %v1378
        %v2566 = vsel %vm2550, %v1115, %v1380
        %v2568 = vsel %vm2550, %v1116, %v1382
        %v2570 = vsel %vm2550, %v1117, %v1384
        %v2572 = vsel %vm2550, %v1118, %v1386
        %v2574 = vsel %vm2550, %v1119, %v1388
        %v2576 = vsel %vm2550, %v1120, %v1390
        %v2578 = vsel %vm2550, %v1121, %v1392
        %v2580 = vsel %vm2550, %v1122, %v1394
        %v2582 = vsel %vm2550, %v1123, %v1396
        %vm2583 = vcmask 48128
        %v2585 = vsel %vm2583, %v2552, %v1495
        %v2587 = vsel %vm2583, %v2554, %v1497
        %v2589 = vsel %vm2583, %v2556, %v1499
        %v2591 = vsel %vm2583, %v2558, %v1501
        %v2593 = vsel %vm2583, %v2560, %v1503
        %v2595 = vsel %vm2583, %v2562, %v1505
        %v2597 = vsel %vm2583, %v2564, %v1507
        %v2599 = vsel %vm2583, %v2566, %v1509
        %v2601 = vsel %vm2583, %v2568, %v1511
        %v2603 = vsel %vm2583, %v2570, %v1513
        %v2605 = vsel %vm2583, %v2572, %v1515
        %v2607 = vsel %vm2583, %v2574, %v1517
        %v2609 = vsel %vm2583, %v2576, %v1519
        %v2611 = vsel %vm2583, %v2578, %v1521
        %v2613 = vsel %vm2583, %v2580, %v1523
        %v2615 = vsel %vm2583, %v2582, %v1525
        %vm2616 = vcmask 72704
        %v2618 = vsel %vm2616, %v2585, %v1607
        %v2620 = vsel %vm2616, %v2587, %v1609
        %v2622 = vsel %vm2616, %v2589, %v1611
        %v2624 = vsel %vm2616, %v2591, %v1613
        %v2626 = vsel %vm2616, %v2593, %v1615
        %v2628 = vsel %vm2616, %v2595, %v1617
        %v2630 = vsel %vm2616, %v2597, %v1619
        %v2632 = vsel %vm2616, %v2599, %v1621
        %v2634 = vsel %vm2616, %v2601, %v1623
        %v2636 = vsel %vm2616, %v2603, %v1625
        %v2638 = vsel %vm2616, %v2605, %v1627
        %v2640 = vsel %vm2616, %v2607, %v1629
        %v2642 = vsel %vm2616, %v2609, %v1631
        %v2644 = vsel %vm2616, %v2611, %v1633
        %v2646 = vsel %vm2616, %v2613, %v1635
        %v2648 = vsel %vm2616, %v2615, %v1637
        %vm2649 = vcmask 97280
        %v2651 = vsel %vm2649, %v2618, %v1879
        %v2653 = vsel %vm2649, %v2620, %v1881
        %v2655 = vsel %vm2649, %v2622, %v1883
        %v2657 = vsel %vm2649, %v2624, %v1885
        %v2659 = vsel %vm2649, %v2626, %v1887
        %v2661 = vsel %vm2649, %v2628, %v1889
        %v2663 = vsel %vm2649, %v2630, %v1891
        %v2665 = vsel %vm2649, %v2632, %v1893
        %v2667 = vsel %vm2649, %v2634, %v1895
        %v2669 = vsel %vm2649, %v2636, %v1897
        %v2671 = vsel %vm2649, %v2638, %v1899
        %v2673 = vsel %vm2649, %v2640, %v1901
        %v2675 = vsel %vm2649, %v2642, %v1903
        %v2677 = vsel %vm2649, %v2644, %v1905
        %v2679 = vsel %vm2649, %v2646, %v1907
        %v2681 = vsel %vm2649, %v2648, %v1909
        %vm2682 = vcmask 121856
        %v2684 = vsel %vm2682, %v2651, %v2007
        %v2686 = vsel %vm2682, %v2653, %v2009
        %v2688 = vsel %vm2682, %v2655, %v2011
        %v2690 = vsel %vm2682, %v2657, %v2013
        %v2692 = vsel %vm2682, %v2659, %v2015
        %v2694 = vsel %vm2682, %v2661, %v2017
        %v2696 = vsel %vm2682, %v2663, %v2019
        %v2698 = vsel %vm2682, %v2665, %v2021
        %v2700 = vsel %vm2682, %v2667, %v2023
        %v2702 = vsel %vm2682, %v2669, %v2025
        %v2704 = vsel %vm2682, %v2671, %v2027
        %v2706 = vsel %vm2682, %v2673, %v2029
        %v2708 = vsel %vm2682, %v2675, %v2031
        %v2710 = vsel %vm2682, %v2677, %v2033
        %v2712 = vsel %vm2682, %v2679, %v2035
        %v2714 = vsel %vm2682, %v2681, %v2037
        %vm2715 = vcmask 146432
        %v2717 = vsel %vm2715, %v2684, %v2119
        %v2719 = vsel %vm2715, %v2686, %v2121
        %v2721 = vsel %vm2715, %v2688, %v2123
        %v2723 = vsel %vm2715, %v2690, %v2125
        %v2725 = vsel %vm2715, %v2692, %v2127
        %v2727 = vsel %vm2715, %v2694, %v2129
        %v2729 = vsel %vm2715, %v2696, %v2131
        %v2731 = vsel %vm2715, %v2698, %v2133
        %v2733 = vsel %vm2715, %v2700, %v2135
        %v2735 = vsel %vm2715, %v2702, %v2137
        %v2737 = vsel %vm2715, %v2704, %v2139
        %v2739 = vsel %vm2715, %v2706, %v2141
        %v2741 = vsel %vm2715, %v2708, %v2143
        %v2743 = vsel %vm2715, %v2710, %v2145
        %v2745 = vsel %vm2715, %v2712, %v2147
        %v2747 = vsel %vm2715, %v2714, %v2149
        %vm2748 = vcmask 171008
        %v2750 = vsel %vm2748, %v2717, %v2391
        %v2752 = vsel %vm2748, %v2719, %v2393
        %v2754 = vsel %vm2748, %v2721, %v2395
        %v2756 = vsel %vm2748, %v2723, %v2397
        %v2758 = vsel %vm2748, %v2725, %v2399
        %v2760 = vsel %vm2748, %v2727, %v2401
        %v2762 = vsel %vm2748, %v2729, %v2403
        %v2764 = vsel %vm2748, %v2731, %v2405
        %v2766 = vsel %vm2748, %v2733, %v2407
        %v2768 = vsel %vm2748, %v2735, %v2409
        %v2770 = vsel %vm2748, %v2737, %v2411
        %v2772 = vsel %vm2748, %v2739, %v2413
        %v2774 = vsel %vm2748, %v2741, %v2415
        %v2776 = vsel %vm2748, %v2743, %v2417
        %v2778 = vsel %vm2748, %v2745, %v2419
        %v2780 = vsel %vm2748, %v2747, %v2421
        %vm2781 = vcmask 195584
        %v2783 = vsel %vm2781, %v2750, %v2519
        %v2785 = vsel %vm2781, %v2752, %v2521
        %v2787 = vsel %vm2781, %v2754, %v2523
        %v2789 = vsel %vm2781, %v2756, %v2525
        %v2791 = vsel %vm2781, %v2758, %v2527
        %v2793 = vsel %vm2781, %v2760, %v2529
        %v2795 = vsel %vm2781, %v2762, %v2531
        %v2797 = vsel %vm2781, %v2764, %v2533
        %v2799 = vsel %vm2781, %v2766, %v2535
        %v2801 = vsel %vm2781, %v2768, %v2537
        %v2803 = vsel %vm2781, %v2770, %v2539
        %v2805 = vsel %vm2781, %v2772, %v2541
        %v2807 = vsel %vm2781, %v2774, %v2543
        %v2809 = vsel %vm2781, %v2776, %v2545
        %v2811 = vsel %vm2781, %v2778, %v2547
        %v2813 = vsel %vm2781, %v2780, %v2549
        %v2814 = vld [vmem:[%s1] sm:$0xf]
        %v2815 = vld [vmem:[%s1 + $0x4] sm:$0xf]
        %v2816 = vld [vmem:[%s1 + $0x8] sm:$0xf]
        %v2817 = vld [vmem:[%s1 + $0xc] sm:$0x3]
        %v2818 = vld [vmem:[%s2] sm:$0x1]
        %v2820 = vlaneseq
        %v2821 = vshrl.u32 %v2820, 7
        %v2822 = vsub.s32 0, %v2821
        %v2823 = vrot.slane %v2818, %v2822
        %v2829 = vunpack.c.l.b16 %v2814
        %v2830 = vunpack.c.l.b16 %v2815
        %v2831 = vunpack.c.l.b16 %v2816
        %v2832 = vunpack.c.l.b16 %v2817
        %v2833 = vpack.c.b16 %v2830, %v2829
        %v2834 = vpack.c.b16 %v2832, %v2831
        %vm2836 = vcmask 220160
        %v2837 = vsel %vm2836, %v2783, 0
        %v2839 = vsel %vm2836, %v2785, 0
        %v2841 = vsel %vm2836, %v2787, 0
        %v2843 = vsel %vm2836, %v2789, 0
        %v2845 = vsel %vm2836, %v2791, 0
        %v2847 = vsel %vm2836, %v2793, 0
        %v2849 = vsel %vm2836, %v2795, 0
        %v2851 = vsel %vm2836, %v2797, 0
        %v2853 = vsel %vm2836, %v2799, 0
        %v2855 = vsel %vm2836, %v2801, 0
        %v2857 = vsel %vm2836, %v2803, 0
        %v2859 = vsel %vm2836, %v2805, 0
        %v2861 = vsel %vm2836, %v2807, 0
        %v2863 = vsel %vm2836, %v2809, 0
        %v2865 = vsel %vm2836, %v2811, 0
        %v2867 = vsel %vm2836, %v2813, 0
        %vm2869 = vcmask 1044480
        %vm2870 = vcmask 1045504
        %v2871 = vsel %vm2869, 4294967295, 65535
        %v2872 = vsel %vm2870, %v2871, 0
        %v2874 = vand.u32 %v2834, %v2872
        %2876 = vmatprep.subr.bf16.mxu0 0
        %2877 = vmatpush1.bf16.msra.mxu0 %v2833
        %2878 = vmatprep.subr.bf16.mxu0 0
        %2879 = vmatpush1.bf16.msra.mxu0 %v2874
        %2880 = vmatprep.subr.bf16.mxu0 0
        %2881 = vmatpush1.bf16.msra.mxu0 0
        %2882 = vmatprep.subr.bf16.mxu0 0
        %2883 = vmatpush1.bf16.msra.mxu0 0
        %2884 = vmatprep.subr.bf16.mxu0 0
        %2885 = vmatpush1.bf16.msra.mxu0 0
        %2886 = vmatprep.subr.bf16.mxu0 0
        %2887 = vmatpush1.bf16.msra.mxu0 0
        %2888 = vmatprep.subr.bf16.mxu0 0
        %2889 = vmatpush1.bf16.msra.mxu0 0
        %2890 = vmatprep.subr.bf16.mxu0 0
        %2891 = vmatpush1.bf16.msra.mxu0 0
        %2892 = vmatprep.subr.bf16.mxu0 0
        %2893 = vmatpush1.bf16.msra.mxu0 0
        %2894 = vmatprep.subr.bf16.mxu0 0
        %2895 = vmatpush1.bf16.msra.mxu0 0
        %2896 = vmatprep.subr.bf16.mxu0 0
        %2897 = vmatpush1.bf16.msra.mxu0 0
        %2898 = vmatprep.subr.bf16.mxu0 0
        %2899 = vmatpush1.bf16.msra.mxu0 0
        %2900 = vmatprep.subr.bf16.mxu0 0
        %2901 = vmatpush1.bf16.msra.mxu0 0
        %2902 = vmatprep.subr.bf16.mxu0 0
        %2903 = vmatpush1.bf16.msra.mxu0 0
        %2904 = vmatprep.subr.bf16.mxu0 0
        %2905 = vmatpush1.bf16.msra.mxu0 0
        %2906 = vmatprep.subr.bf16.mxu0 0
        %2907 = vmatpush1.bf16.msra.mxu0 0
        %2908 = vmatprep.mubr.bf16.mxu0 0
        %2909 = vmatmul.mubr.bf16.gmra.mrb[0].mxu0 %v2837
        %v2910 = vpop.f32.mrb[0].mxu0
        %v2911 = vadd.f32 %v2823, %v2910
        %v2912 = vpop.f32.mrb[0].mxu0
        %v2913 = vpop.f32.mrb[0].mxu0
        %v2914 = vadd.f32 %v2823, %v2913
        %v2915 = vpop.f32.mrb[0].mxu0
        %2916 = vmatprep.mubr.bf16.mxu0 0
        %2917 = vmatmul.mubr.bf16.gmra.mrb[0].mxu0 %v2839
        %v2918 = vpop.f32.mrb[0].mxu0
        %v2919 = vadd.f32 %v2823, %v2918
        %v2920 = vpop.f32.mrb[0].mxu0
        %v2921 = vpop.f32.mrb[0].mxu0
        %v2922 = vadd.f32 %v2823, %v2921
        %v2923 = vpop.f32.mrb[0].mxu0
        %2924 = vmatprep.mubr.bf16.mxu0 0
        %2925 = vmatmul.mubr.bf16.gmra.mrb[0].mxu0 %v2841
        %v2926 = vpop.f32.mrb[0].mxu0
        %v2927 = vadd.f32 %v2823, %v2926
        %v2928 = vpop.f32.mrb[0].mxu0
        %v2929 = vpop.f32.mrb[0].mxu0
        %v2930 = vadd.f32 %v2823, %v2929
        %v2931 = vpop.f32.mrb[0].mxu0
        %2932 = vmatprep.mubr.bf16.mxu0 0
        %2933 = vmatmul.mubr.bf16.gmra.mrb[0].mxu0 %v2843
        %v2934 = vpop.f32.mrb[0].mxu0
        %v2935 = vadd.f32 %v2823, %v2934
        %v2936 = vpop.f32.mrb[0].mxu0
        %v2937 = vpop.f32.mrb[0].mxu0
        %v2938 = vadd.f32 %v2823, %v2937
        %v2939 = vpop.f32.mrb[0].mxu0
        %2940 = vmatprep.mubr.bf16.mxu0 0
        %2941 = vmatmul.mubr.bf16.gmra.mrb[0].mxu0 %v2845
        %v2942 = vpop.f32.mrb[0].mxu0
        %v2943 = vadd.f32 %v2823, %v2942
        %v2944 = vpop.f32.mrb[0].mxu0
        %v2945 = vpop.f32.mrb[0].mxu0
        %v2946 = vadd.f32 %v2823, %v2945
        %v2947 = vpop.f32.mrb[0].mxu0
        %2948 = vmatprep.mubr.bf16.mxu0 0
        %2949 = vmatmul.mubr.bf16.gmra.mrb[0].mxu0 %v2847
        %v2950 = vpop.f32.mrb[0].mxu0
        %v2951 = vadd.f32 %v2823, %v2950
        %v2952 = vpop.f32.mrb[0].mxu0
        %v2953 = vpop.f32.mrb[0].mxu0
        %v2954 = vadd.f32 %v2823, %v2953
        %v2955 = vpop.f32.mrb[0].mxu0
        %2956 = vmatprep.mubr.bf16.mxu0 0
        %2957 = vmatmul.mubr.bf16.gmra.mrb[0].mxu0 %v2849
        %v2958 = vpop.f32.mrb[0].mxu0
        %v2959 = vadd.f32 %v2823, %v2958
        %v2960 = vpop.f32.mrb[0].mxu0
        %v2961 = vpop.f32.mrb[0].mxu0
        %v2962 = vadd.f32 %v2823, %v2961
        %v2963 = vpop.f32.mrb[0].mxu0
        %2964 = vmatprep.mubr.bf16.mxu0 0
        %2965 = vmatmul.mubr.bf16.gmra.mrb[0].mxu0 %v2851
        %v2966 = vpop.f32.mrb[0].mxu0
        %v2967 = vadd.f32 %v2823, %v2966
        %v2968 = vpop.f32.mrb[0].mxu0
        %v2969 = vpop.f32.mrb[0].mxu0
        %v2970 = vadd.f32 %v2823, %v2969
        %v2971 = vpop.f32.mrb[0].mxu0
        %2972 = vmatprep.mubr.bf16.mxu0 0
        %2973 = vmatmul.mubr.bf16.gmra.mrb[0].mxu0 %v2853
        %v2974 = vpop.f32.mrb[0].mxu0
        %v2975 = vadd.f32 %v2823, %v2974
        %v2976 = vpop.f32.mrb[0].mxu0
        %v2977 = vpop.f32.mrb[0].mxu0
        %v2978 = vadd.f32 %v2823, %v2977
        %v2979 = vpop.f32.mrb[0].mxu0
        %2980 = vmatprep.mubr.bf16.mxu0 0
        %2981 = vmatmul.mubr.bf16.gmra.mrb[0].mxu0 %v2855
        %v2982 = vpop.f32.mrb[0].mxu0
        %v2983 = vadd.f32 %v2823, %v2982
        %v2984 = vpop.f32.mrb[0].mxu0
        %v2985 = vpop.f32.mrb[0].mxu0
        %v2986 = vadd.f32 %v2823, %v2985
        %v2987 = vpop.f32.mrb[0].mxu0
        %2988 = vmatprep.mubr.bf16.mxu0 0
        %2989 = vmatmul.mubr.bf16.gmra.mrb[0].mxu0 %v2857
        %v2990 = vpop.f32.mrb[0].mxu0
        %v2991 = vadd.f32 %v2823, %v2990
        %v2992 = vpop.f32.mrb[0].mxu0
        %v2993 = vpop.f32.mrb[0].mxu0
        %v2994 = vadd.f32 %v2823, %v2993
        %v2995 = vpop.f32.mrb[0].mxu0
        %2996 = vmatprep.mubr.bf16.mxu0 0
        %2997 = vmatmul.mubr.bf16.gmra.mrb[0].mxu0 %v2859
        %v2998 = vpop.f32.mrb[0].mxu0
        %v2999 = vadd.f32 %v2823, %v2998
        %v3000 = vpop.f32.mrb[0].mxu0
        %v3001 = vpop.f32.mrb[0].mxu0
        %v3002 = vadd.f32 %v2823, %v3001
        %v3003 = vpop.f32.mrb[0].mxu0
        %3004 = vmatprep.mubr.bf16.mxu0 0
        %3005 = vmatmul.mubr.bf16.gmra.mrb[0].mxu0 %v2861
        %v3006 = vpop.f32.mrb[0].mxu0
        %v3007 = vadd.f32 %v2823, %v3006
        %v3008 = vpop.f32.mrb[0].mxu0
        %v3009 = vpop.f32.mrb[0].mxu0
        %v3010 = vadd.f32 %v2823, %v3009
        %v3011 = vpop.f32.mrb[0].mxu0
        %3012 = vmatprep.mubr.bf16.mxu0 0
        %3013 = vmatmul.mubr.bf16.gmra.mrb[0].mxu0 %v2863
        %v3014 = vpop.f32.mrb[0].mxu0
        %v3015 = vadd.f32 %v2823, %v3014
        %v3016 = vpop.f32.mrb[0].mxu0
        %v3017 = vpop.f32.mrb[0].mxu0
        %v3018 = vadd.f32 %v2823, %v3017
        %v3019 = vpop.f32.mrb[0].mxu0
        %3020 = vmatprep.mubr.bf16.mxu0 0
        %3021 = vmatmul.mubr.bf16.gmra.mrb[0].mxu0 %v2865
        %v3022 = vpop.f32.mrb[0].mxu0
        %v3023 = vadd.f32 %v2823, %v3022
        %v3024 = vpop.f32.mrb[0].mxu0
        %v3025 = vpop.f32.mrb[0].mxu0
        %v3026 = vadd.f32 %v2823, %v3025
        %v3027 = vpop.f32.mrb[0].mxu0
        %3028 = vmatprep.mubr.bf16.mxu0 0
        %3029 = vmatmul.mubr.bf16.gmra.mrb[0].mxu0 %v2867
        %v3030 = vpop.f32.mrb[0].mxu0
        %v3031 = vadd.f32 %v2823, %v3030
        %v3032 = vpop.f32.mrb[0].mxu0
        %v3033 = vpop.f32.mrb[0].mxu0
        %v3034 = vadd.f32 %v2823, %v3033
        %v3035 = vpop.f32.mrb[0].mxu0
        %3036 = vdwg.mxu0
        %v3037 = vmax.f32 %v2911, 0.0
        %v3038 = vmax.f32 %v2914, 0.0
        %v3039 = vmax.f32 %v2919, 0.0
        %v3040 = vmax.f32 %v2922, 0.0
        %v3041 = vmax.f32 %v2927, 0.0
        %v3042 = vmax.f32 %v2930, 0.0
        %v3043 = vmax.f32 %v2935, 0.0
        %v3044 = vmax.f32 %v2938, 0.0
        %v3045 = vmax.f32 %v2943, 0.0
        %v3046 = vmax.f32 %v2946, 0.0
        %v3047 = vmax.f32 %v2951, 0.0
        %v3048 = vmax.f32 %v2954, 0.0
        %v3049 = vmax.f32 %v2959, 0.0
        %v3050 = vmax.f32 %v2962, 0.0
        %v3051 = vmax.f32 %v2967, 0.0
        %v3052 = vmax.f32 %v2970, 0.0
        %v3053 = vmax.f32 %v2975, 0.0
        %v3054 = vmax.f32 %v2978, 0.0
        %v3055 = vmax.f32 %v2983, 0.0
        %v3056 = vmax.f32 %v2986, 0.0
        %v3057 = vmax.f32 %v2991, 0.0
        %v3058 = vmax.f32 %v2994, 0.0
        %v3059 = vmax.f32 %v2999, 0.0
        %v3060 = vmax.f32 %v3002, 0.0
        %v3061 = vmax.f32 %v3007, 0.0
        %v3062 = vmax.f32 %v3010, 0.0
        %v3063 = vmax.f32 %v3015, 0.0
        %v3064 = vmax.f32 %v3018, 0.0
        %v3065 = vmax.f32 %v3023, 0.0
        %v3066 = vmax.f32 %v3026, 0.0
        %v3067 = vmax.f32 %v3031, 0.0
        %v3068 = vmax.f32 %v3034, 0.0
        %v3069 = vpack.c.bf16 %v3038, %v3037
        %v3070 = vpack.c.bf16 %v3040, %v3039
        %v3071 = vpack.c.bf16 %v3042, %v3041
        %v3072 = vpack.c.bf16 %v3044, %v3043
        %v3073 = vpack.c.bf16 %v3046, %v3045
        %v3074 = vpack.c.bf16 %v3048, %v3047
        %v3075 = vpack.c.bf16 %v3050, %v3049
        %v3076 = vpack.c.bf16 %v3052, %v3051
        %v3077 = vpack.c.bf16 %v3054, %v3053
        %v3078 = vpack.c.bf16 %v3056, %v3055
        %v3079 = vpack.c.bf16 %v3058, %v3057
        %v3080 = vpack.c.bf16 %v3060, %v3059
        %v3081 = vpack.c.bf16 %v3062, %v3061
        %v3082 = vpack.c.bf16 %v3064, %v3063
        %v3083 = vpack.c.bf16 %v3066, %v3065
        %v3084 = vpack.c.bf16 %v3068, %v3067
        %v3101 = vunpack.c.l.b16 %v3069
        %v3102 = vunpack.c.h.b16 %v3069
        %v3103 = vunpack.c.l.b16 %v3070
        %v3104 = vunpack.c.h.b16 %v3070
        %v3105 = vunpack.c.l.b16 %v3071
        %v3106 = vunpack.c.h.b16 %v3071
        %v3107 = vunpack.c.l.b16 %v3072
        %v3108 = vunpack.c.h.b16 %v3072
        %v3109 = vunpack.c.l.b16 %v3073
        %v3110 = vunpack.c.h.b16 %v3073
        %v3111 = vunpack.c.l.b16 %v3074
        %v3112 = vunpack.c.h.b16 %v3074
        %v3113 = vunpack.c.l.b16 %v3075
        %v3114 = vunpack.c.h.b16 %v3075
        %v3115 = vunpack.c.l.b16 %v3076
        %v3116 = vunpack.c.h.b16 %v3076
        %v3117 = vunpack.c.l.b16 %v3077
        %v3118 = vunpack.c.h.b16 %v3077
        %v3119 = vunpack.c.l.b16 %v3078
        %v3120 = vunpack.c.h.b16 %v3078
        %v3121 = vunpack.c.l.b16 %v3079
        %v3122 = vunpack.c.h.b16 %v3079
        %v3123 = vunpack.c.l.b16 %v3080
        %v3124 = vunpack.c.h.b16 %v3080
        %v3125 = vunpack.c.l.b16 %v3081
        %v3126 = vunpack.c.h.b16 %v3081
        %v3127 = vunpack.c.l.b16 %v3082
        %v3128 = vunpack.c.h.b16 %v3082
        %v3129 = vunpack.c.l.b16 %v3083
        %v3130 = vunpack.c.h.b16 %v3083
        %v3131 = vunpack.c.l.b16 %v3084
        %v3132 = vunpack.c.h.b16 %v3084
        %v3133 = vpack.c.b16 %v3101, %v3101
        %v3134 = vpack.c.b16 %v3102, %v3102
        %v3135 = vpack.c.b16 %v3103, %v3103
        %v3136 = vpack.c.b16 %v3104, %v3104
        %v3137 = vpack.c.b16 %v3105, %v3105
        %v3138 = vpack.c.b16 %v3106, %v3106
        %v3139 = vpack.c.b16 %v3107, %v3107
        %v3140 = vpack.c.b16 %v3108, %v3108
        %v3141 = vpack.c.b16 %v3109, %v3109
        %v3142 = vpack.c.b16 %v3110, %v3110
        %v3143 = vpack.c.b16 %v3111, %v3111
        %v3144 = vpack.c.b16 %v3112, %v3112
        %v3145 = vpack.c.b16 %v3113, %v3113
        %v3146 = vpack.c.b16 %v3114, %v3114
        %v3147 = vpack.c.b16 %v3115, %v3115
        %v3148 = vpack.c.b16 %v3116, %v3116
        %v3149 = vpack.c.b16 %v3117, %v3117
        %v3150 = vpack.c.b16 %v3118, %v3118
        %v3151 = vpack.c.b16 %v3119, %v3119
        %v3152 = vpack.c.b16 %v3120, %v3120
        %v3153 = vpack.c.b16 %v3121, %v3121
        %v3154 = vpack.c.b16 %v3122, %v3122
        %v3155 = vpack.c.b16 %v3123, %v3123
        %v3156 = vpack.c.b16 %v3124, %v3124
        %v3157 = vpack.c.b16 %v3125, %v3125
        %v3158 = vpack.c.b16 %v3126, %v3126
        %v3159 = vpack.c.b16 %v3127, %v3127
        %v3160 = vpack.c.b16 %v3128, %v3128
        %v3161 = vpack.c.b16 %v3129, %v3129
        %v3162 = vpack.c.b16 %v3130, %v3130
        %v3163 = vpack.c.b16 %v3131, %v3131
        %v3164 = vpack.c.b16 %v3132, %v3132
        %vm3197 = vcmask 519168
        %3198 = vst.msk [vmem:[%s177] sm:$0xf] %vm3197, %v3133
        %3199 = vst.msk [vmem:[%s177 + $0x4] sm:$0xf] %vm3197, %v3134
        %3200 = vst.msk [vmem:[%s177 + $0x8] sm:$0xf] %vm3197, %v3135
        %3201 = vst.msk [vmem:[%s177 + $0xc] sm:$0xf] %vm3197, %v3136
        %3202 = vst.msk [vmem:[%s177 + $0x10] sm:$0xf] %vm3197, %v3137
        %3203 = vst.msk [vmem:[%s177 + $0x14] sm:$0xf] %vm3197, %v3138
        %3204 = vst.msk [vmem:[%s177 + $0x18] sm:$0xf] %vm3197, %v3139
        %3205 = vst.msk [vmem:[%s177 + $0x1c] sm:$0xf] %vm3197, %v3140
        %3206 = vst.msk [vmem:[%s177 + $0x20] sm:$0xf] %vm3197, %v3141
        %3207 = vst.msk [vmem:[%s177 + $0x24] sm:$0xf] %vm3197, %v3142
        %3208 = vst.msk [vmem:[%s177 + $0x28] sm:$0xf] %vm3197, %v3143
        %3209 = vst.msk [vmem:[%s177 + $0x2c] sm:$0xf] %vm3197, %v3144
        %3210 = vst.msk [vmem:[%s177 + $0x30] sm:$0xf] %vm3197, %v3145
        %3211 = vst.msk [vmem:[%s177 + $0x34] sm:$0xf] %vm3197, %v3146
        %3212 = vst.msk [vmem:[%s177 + $0x38] sm:$0xf] %vm3197, %v3147
        %3213 = vst.msk [vmem:[%s177 + $0x3c] sm:$0xf] %vm3197, %v3148
        %3214 = vst.msk [vmem:[%s177 + $0x40] sm:$0xf] %vm3197, %v3149
        %3215 = vst.msk [vmem:[%s177 + $0x44] sm:$0xf] %vm3197, %v3150
        %3216 = vst.msk [vmem:[%s177 + $0x48] sm:$0xf] %vm3197, %v3151
        %3217 = vst.msk [vmem:[%s177 + $0x4c] sm:$0xf] %vm3197, %v3152
        %3218 = vst.msk [vmem:[%s177 + $0x50] sm:$0xf] %vm3197, %v3153
        %3219 = vst.msk [vmem:[%s177 + $0x54] sm:$0xf] %vm3197, %v3154
        %3220 = vst.msk [vmem:[%s177 + $0x58] sm:$0xf] %vm3197, %v3155
        %3221 = vst.msk [vmem:[%s177 + $0x5c] sm:$0xf] %vm3197, %v3156
        %3222 = vst.msk [vmem:[%s177 + $0x60] sm:$0xf] %vm3197, %v3157
        %3223 = vst.msk [vmem:[%s177 + $0x64] sm:$0xf] %vm3197, %v3158
        %3224 = vst.msk [vmem:[%s177 + $0x68] sm:$0xf] %vm3197, %v3159
        %3225 = vst.msk [vmem:[%s177 + $0x6c] sm:$0xf] %vm3197, %v3160
        %3226 = vst.msk [vmem:[%s177 + $0x70] sm:$0xf] %vm3197, %v3161
        %3227 = vst.msk [vmem:[%s177 + $0x74] sm:$0xf] %vm3197, %v3162
        %3228 = vst.msk [vmem:[%s177 + $0x78] sm:$0xf] %vm3197, %v3163
        %3229 = vst.msk [vmem:[%s177 + $0x7c] sm:$0xf] %vm3197, %v3164
        %s3230 = sand.u32 %s107, 1
        %s3231 = scalar_lea.sflag [#allocation4], %s3230
        %s3232 = sand.u32 %s107, 1
        %s3233 = smul.addr %s3232, 128
        %s3234 = scalar_lea.vmem [#allocation3], %s3233
        // Predicated region
        $region33: #{tpu_custom_call.1} parent=31 // pred_check
          %p3235 = pneg %p117
        $region34: #{tpu_custom_call.1} parent=31 // pred_check_branch
          %3237 = sbr.rel (%p3235) target = $region36
        $region35: #{tpu_custom_call.1} parent=31 // pred_region
          %s3238 = smul.u32 16, %s22
          %s3240 = ssub.s32 2048, 2048
          %3241 = vsyncadd %s3231, %s3240
          %s3242 = smul.addr %s3238, 2
          %s3243 = smul.addr %s21, 32
          %s3244 = sadd.s32 %s3242, %s3243
          %s3245 = smul.addr %s3244, 64
          %s3246 = scalar_lea.hbm %s3, %s3245
          %s3247 = sshll.u32 %s3234, 4
          %s3248 = int_to_ptr.vmem [resolvable:$true] %s3247
          %3253 = dma.vmem_to_hbm [thread:$0]  %s3248, 2048, %s3246, %s3231, 64, 64, 4
        $region36: #{tpu_custom_call.1} parent=31 // pred_fallthru
          _
      $region32: #{tpu_custom_call.1} parent=5 // pred_fallthru
        _
      %p3254 = scmp.le.s32.totalorder 2, %s12
      // Predicated region
      $region37: #{tpu_custom_call.1} parent=5 // pred_check
        %p3255 = pneg %p3254
      $region38: #{tpu_custom_call.1} parent=5 // pred_check_branch
        %3257 = sbr.rel (%p3255) target = $region40
      $region39: #{tpu_custom_call.1} parent=5 // pred_region
        %s3258 = ssub.s32 %s12, 2
        // Predicated region
        $region41: #{tpu_custom_call.1} parent=39 // pred_check
          %p3259 = pneg %p123
        $region42: #{tpu_custom_call.1} parent=39 // pred_check_branch
          %3261 = sbr.rel (%p3259) target = $region44
        $region43: #{tpu_custom_call.1} parent=39 // pred_region
          %s3262 = sand.u32 %s108, 1
          %s3263 = scalar_lea.sflag [#allocation4], %s3262
          %s3264 = sand.u32 %s108, 1
          %s3265 = smul.addr %s3264, 128
          %s3266 = scalar_lea.vmem [#allocation3], %s3265
          %3267 = dma.done %s3263, 2048
        $region44: #{tpu_custom_call.1} parent=39 // pred_fallthru
          _
      $region40: #{tpu_custom_call.1} parent=5 // pred_fallthru
        _
    $region6: #{tpu_custom_call.1} parent=1 // loop_footer
      %s16 = sadd.s32 1, %s12
    $region7: #{tpu_custom_call.1} parent=1 // loop_footer_branch
      %11 = sbr.rel target = $region3
    $region8: #{tpu_custom_call.1} parent=1 // loop_exit
      _
    %3268 = vsyncpa [#allocation4], 1
    %s3269 = scalar_lea.sflag [#allocation4], 1
    %3270 = vsyncpa %s3269, 1

</llo_original>
